<compile_context>
chip_gen: v5e
topology: v5e:2x2
jax: 0.10.0
libtpu: 0.0.40
codegen_flags: <defaults>
</compile_context>

<pallas_src>
import functools
import math

import jax
import jax.numpy as jnp
from jax.experimental import pallas as pl
from jax.experimental.pallas import tpu as pltpu


def _round_up(x, m):
    return ((x + m - 1) // m) * m


def _vmem_capacity_bytes():
    try:
        return int(pltpu.get_tpu_info().vmem_capacity_bytes)
    except Exception:
        return 64 * 1024 * 1024   # conservative fallback (v7x per-core VMEM)


_PACK_LOW_FIRST = None


def _pack_low_first():
    """Does XLA's narrowing bitcast put the uint32 LOW half at index 0?

    Probed once on the actual backend so the in-kernel bit packing always
    matches the wrapper-side `lax.bitcast_convert_type` unpack convention.
    """
    global _PACK_LOW_FIRST
    if _PACK_LOW_FIRST is None:
        with jax.ensure_compile_time_eval():
            # low half 0x3F80 == bf16(1.0), high half 0x4000 == bf16(2.0)
            probe = jax.lax.bitcast_convert_type(
                jnp.array([0x40003F80], dtype=jnp.uint32), jnp.bfloat16)
            first = float(probe.reshape(-1)[0])
        _PACK_LOW_FIRST = (first == 1.0)
    return _PACK_LOW_FIRST


# --------------------------------------------------------------------------
# Fused path: 1x1 conv + PixelShuffle(2) with bf16 output.
# --------------------------------------------------------------------------
def _fused_proj_shuffle_kernel(x_ref, w_ref, b_ref, o_ref, *,
                               W, Ht, r, cdt, low_first):
    # x_ref: (C, Ht*W) native dtype   -- Ht whole input rows, pixels on lanes
    # w_ref: (r*r, C, Cin) compute dtype, grouped by sub-pixel k = dy*r + dx
    # b_ref: (r*r, C, 1) f32
    # o_ref: (C, Ht*r, W) uint32      -- each u32 packs the (dx=0, dx=1) pair
    x = x_ref[...].astype(cdt)
    for dy in range(r):
        lo = jnp.dot(w_ref[dy * r + 0], x,
                     preferred_element_type=jnp.float32) + b_ref[dy * r + 0]
        hi = jnp.dot(w_ref[dy * r + 1], x,
                     preferred_element_type=jnp.float32) + b_ref[dy * r + 1]
        # bf16 bits are the top half of the f32 produced by a bf16->f32
        # round-trip, so packing is pure 32-bit VPU work (free under HBM bound).
        lo32 = pltpu.bitcast(lo.astype(jnp.bfloat16).astype(jnp.float32),
                             jnp.uint32)
        hi32 = pltpu.bitcast(hi.astype(jnp.bfloat16).astype(jnp.float32),
                             jnp.uint32)
        if low_first:
            packed = (lo32 >> 16) | hi32      # low half = dx=0, high = dx=1
        else:
            packed = (hi32 >> 16) | lo32
        # Scatter the Ht packed rows to output rows h*r + dy of this block.
        for h in range(Ht):
            o_ref[:, h * r + dy, :] = packed[:, h * W:(h + 1) * W]


def _fused_upsample(x_nchw, w_oc, bias, r, *, compute_dtype):
    """(N, C, H, W) -> (N, C, H*r, W*r) bf16, PixelShuffle fused in-kernel."""
    N, C, H, W = x_nchw.shape
    O = w_oc.shape[0]
    assert r == 2 and O == C * r * r
    cdt = jnp.dtype(compute_dtype)
    in_b = jnp.dtype(x_nchw.dtype).itemsize
    HW = H * W

    # Weight/bias regrouped by sub-pixel k = dy*r + dx (tiny XLA ops):
    #   w_perm[k, c, :] = W[c*r*r + k, :]
    w_perm = w_oc.reshape(C, r * r, C).transpose(1, 0, 2).astype(cdt)
    b_perm = bias.reshape(C, r * r).transpose(1, 0).reshape(r * r, C, 1)
    b_perm = b_perm.astype(jnp.float32)

    # --- pick Ht = input rows per grid step.
    cap = _vmem_capacity_bytes()
    budget = cap // 2 if cap >= (100 << 20) else cap * 3 // 8
    # per input row: x (x2 buffers), u32 out (x2 buffers, r rows), f32 temps.
    per_row = C * W * (2 * in_b + 2 * r * 4 + 4 * 4)
    resident = 2 * (r * r * C * C * cdt.itemsize) + 2 * (r * r * C) * 128 * 4
    max_unroll = 32

    def _feasible(d):
        if d == H:
            return True
        return H % d == 0 and (d * r) % 8 == 0 and (d * W) % 128 == 0

    cands = [d for d in range(1, H + 1) if _feasible(d)]
    fits = [d for d in cands
            if d <= max_unroll and resident + per_row * d <= budget]
    Ht = None
    if fits:
        for min_steps in (4, 2, 1):          # keep both v7x cores busy
            ok = [d for d in fits if N * (H // d) >= min_steps]
            if ok:
                Ht = max(ok)
                break
    if Ht is None:
        return None                          # caller falls back to unfused path

    x3 = x_nchw.reshape(N, C, HW)            # free view of contiguous NCHW
    usage = resident + per_row * Ht
    vmem_limit = int(min(cap - (2 << 20), max(usage + (16 << 20), 32 << 20)))

    cost = pl.CostEstimate(
        flops=2 * N * HW * C * (r * r * C),
        transcendentals=0,
        bytes_accessed=(N * HW * C * in_b + N * C * HW * r * 4
                        + r * r * C * C * cdt.itemsize + r * r * C * 4),
    )

    kern = functools.partial(_fused_proj_shuffle_kernel,
                             W=W, Ht=Ht, r=r, cdt=cdt,
                             low_first=_pack_low_first())

    y32 = pl.pallas_call(
        kern,
        out_shape=jax.ShapeDtypeStruct((N, C, H * r, W), jnp.uint32),
        grid_spec=pltpu.PrefetchScalarGridSpec(
            num_scalar_prefetch=0,
            grid=(N, H // Ht),
            in_specs=[
                pl.BlockSpec((None, C, Ht * W), lambda n, i: (n, 0, i)),
                pl.BlockSpec((r * r, C, C), lambda n, i: (0, 0, 0)),
                pl.BlockSpec((r * r, C, 1), lambda n, i: (0, 0, 0)),
            ],
            out_specs=pl.BlockSpec((None, C, Ht * r, W),
                                   lambda n, i: (n, 0, i, 0)),
        ),
        compiler_params=pltpu.CompilerParams(
            dimension_semantics=("parallel", "parallel"),
            vmem_limit_bytes=vmem_limit,
        ),
        cost_estimate=cost,
    )(x3, w_perm, b_perm)

    # Unpack the (dx=0, dx=1) pairs: bitcast view + two contiguous dim merges,
    # no transpose / no extra data-movement pass.
    pairs = jax.lax.bitcast_convert_type(y32, jnp.bfloat16)   # (N, C, H*r, W, 2)
    return pairs.reshape(N, C, H * r, W * r)


# --------------------------------------------------------------------------
# Fallback path: projection kernel (lane-dense output) + XLA PixelShuffle.
# --------------------------------------------------------------------------
def _proj_kernel(x_ref, w_ref, b_ref, o_ref, *, cdt):
    # x_ref: (C, tp) native dtype (cast in-kernel), w_ref: (O, C) cdt,
    # b_ref: (O, 1) f32, o_ref: (O, tp).  f32 accumulation on the MXU.
    x = x_ref[...].astype(cdt)
    acc = jnp.dot(w_ref[...], x, preferred_element_type=jnp.float32)
    o_ref[...] = (acc + b_ref[...]).astype(o_ref.dtype)


def _proj_pallas(x3, w_oc, bias, *, compute_dtype, out_dtype):
    """x3: (N, C, HW) native dtype, w_oc: (O, C), bias: (O,) -> (N, O, HW)."""
    N, C, HW = x3.shape
    O = w_oc.shape[0]
    cdt = jnp.dtype(compute_dtype)
    in_b = jnp.dtype(x3.dtype).itemsize
    out_b = jnp.dtype(out_dtype).itemsize

    cap = _vmem_capacity_bytes()
    budget = cap // 2                       # 64 MiB on 128 MiB parts, 32 on v7x
    resident = 2 * C * O * cdt.itemsize + 2 * O * 128 * 4
    per_col = 2 * (C * in_b + O * out_b) + O * 4   # x/out tiles (x2) + f32 acc

    if HW <= 128:
        tp = HW
    else:
        avail = (budget - resident) // max(per_col, 1)
        tp = max(128, min(8192, int(avail)))
        tp = (tp // 128) * 128
        tp = min(tp, _round_up(HW, 128))
        if N == 1:   # keep >= 2 grid steps so both v7x TensorCores get work
            tp = min(tp, max(128, _round_up(pl.cdiv(HW, 2), 128)))
        tp = max(tp, 128)
    n_hw = pl.cdiv(HW, tp)

    usage = resident + per_col * tp
    vmem_limit = int(min(cap - (2 << 20), max(usage + (16 << 20), 32 << 20)))

    cost = pl.CostEstimate(
        flops=2 * N * HW * C * O,
        transcendentals=0,
        bytes_accessed=N * HW * (C * in_b + O * out_b)
        + C * O * cdt.itemsize + O * 4,
    )

    kern = functools.partial(_proj_kernel, cdt=cdt)
    return pl.pallas_call(
        kern,
        out_shape=jax.ShapeDtypeStruct((N, O, HW), out_dtype),
        grid_spec=pltpu.PrefetchScalarGridSpec(
            num_scalar_prefetch=0,
            grid=(N, n_hw),
            in_specs=[
                pl.BlockSpec((None, C, tp), lambda n, i: (n, 0, i)),
                pl.BlockSpec((O, C), lambda n, i: (0, 0)),
                pl.BlockSpec((O, 1), lambda n, i: (0, 0)),
            ],
            out_specs=pl.BlockSpec((None, O, tp), lambda n, i: (n, 0, i)),
        ),
        compiler_params=pltpu.CompilerParams(
            dimension_semantics=("parallel", "parallel"),
            vmem_limit_bytes=vmem_limit,
        ),
        cost_estimate=cost,
    )(x3, w_oc.astype(cdt), bias.astype(jnp.float32).reshape(O, 1))


# --------------------------------------------------------------------------
# Public forward.
# --------------------------------------------------------------------------
def upsample_forward(x_nchw, weight_ocii, bias, factor=2, *,
                     compute_dtype=jnp.bfloat16, out_dtype=None):
    """Equivalent of UpSample.forward.

    x_nchw:      (N, C, H, W)
    weight_ocii: (O, C, 1, 1) with O = C*factor*factor  (PyTorch conv layout)
    bias:        (O,)
    returns      (N, C, H*factor, W*factor), dtype out_dtype (default x dtype)
    """
    N, C, H, W = x_nchw.shape
    O = weight_ocii.shape[0]
    r = int(factor)
    assert O == C * r * r
    out_dtype = jnp.dtype(x_nchw.dtype if out_dtype is None else out_dtype)

    w_oc = weight_ocii.reshape(O, C)               # (O, C, 1, 1) -> (O, C)

    # Fast path: PixelShuffle fused into the kernel epilogue.
    if r == 2 and out_dtype == jnp.dtype(jnp.bfloat16):
        try:
            y = _fused_upsample(x_nchw, w_oc, bias, r,
                                compute_dtype=compute_dtype)
            if y is not None:
                return y
        except Exception:
            pass   # fall through to the unfused path

    # TODO(synk): for f32/fp16 outputs or factor != 2 the PixelShuffle stays an
    # XLA reshape + transpose (the lane interleave has no dense-store form
    # without the 2x16-bit -> u32 pack); only the projection runs in Pallas.
    HW = H * W
    x3 = x_nchw.reshape(N, C, HW)                  # free view of contiguous NCHW
    y3 = _proj_pallas(x3, w_oc, bias,
                      compute_dtype=compute_dtype, out_dtype=out_dtype)
    feat = y3.reshape(N, C, r, r, H, W)
    feat = jnp.transpose(feat, (0, 1, 4, 2, 5, 3))
    return feat.reshape(N, C, H * r, W * r)


def init_params(key, n_chan, factor=2, dtype=jnp.float32):
    """Deterministic init matching UpSample.__init__ (synthetic)."""
    out_chan = n_chan * factor * factor
    k_w, k_b = jax.random.split(key)
    fan_in, fan_out = n_chan, out_chan
    std = math.sqrt(2.0 / (fan_in + fan_out))      # xavier_normal_, 1x1 kernel
    weight = std * jax.random.normal(k_w, (out_chan, n_chan, 1, 1), dtype=dtype)
    bound = 1.0 / math.sqrt(fan_in)                # Conv2d default bias init
    bias = jax.random.uniform(k_b, (out_chan,), dtype=dtype,
                              minval=-bound, maxval=bound)
    return weight, bias


def _reference(x, weight, bias, r):
    """Plain-JAX reference: 1x1 conv + PixelShuffle (PyTorch semantics)."""
    N, C, H, W = x.shape
    O = weight.shape[0]
    y = jnp.einsum("nchw,oc->nohw", x, weight.reshape(O, C)) \
        + bias[None, :, None, None]
    y = y.reshape(N, C, r, r, H, W)
    y = jnp.transpose(y, (0, 1, 4, 2, 5, 3))
    return y.reshape(N, C, H * r, W * r)


if __name__ == "__main__":
    key = jax.random.PRNGKey(0)
    k_x, k_p = jax.random.split(key)

    N, C, H, W = 2, 4, 16, 16
    factor = 2

    x = jax.random.normal(k_x, (N, C, H, W), dtype=jnp.float32)
    weight, bias = init_params(k_p, C, factor)

    # Fused path: bf16 output, PixelShuffle folded into the kernel epilogue.
    out_bf16 = upsample_forward(x, weight, bias, factor=factor,
                                out_dtype=jnp.bfloat16)
    out_bf16 = jax.block_until_ready(out_bf16)
    assert out_bf16.shape == (N, C, H * factor, W * factor), out_bf16.shape
    assert out_bf16.dtype == jnp.bfloat16
    ref_bf16 = _reference(x.astype(jnp.bfloat16).astype(jnp.float32),
                          weight.astype(jnp.bfloat16).astype(jnp.float32),
                          bias, factor)
    assert jnp.allclose(out_bf16.astype(jnp.float32), ref_bf16,
                        atol=3e-2, rtol=3e-2)

    # Full-f32 path (projection kernel + XLA PixelShuffle) vs exact reference.
    out_f32 = upsample_forward(x, weight, bias, factor=factor,
                               compute_dtype=jnp.float32)
    out_f32 = jax.block_until_ready(out_f32)
    ref_f32 = _reference(x, weight, bias, factor)
    assert jnp.allclose(out_f32, ref_f32, atol=2e-5, rtol=2e-5)

    print("KERNEL_OK")
</pallas_src>

<mosaic_0001>
module attributes {stable_mosaic.version = 11 : i64} {
  func.func @_fused_proj_shuffle_kernel(%arg0: i32, %arg1: i32, %arg2: memref<1x4x128xf32, #tpu.memory_space<vmem>>, %arg3: memref<4x4x4xbf16, #tpu.memory_space<vmem>>, %arg4: memref<4x4x1xf32, #tpu.memory_space<vmem>>, %arg5: memref<1x4x16x16xi32, #tpu.memory_space<vmem>>) attributes {dimension_semantics = [#tpu.dimension_semantics<parallel>, #tpu.dimension_semantics<parallel>], iteration_bounds = array<i64: 2, 2>, scalar_prefetch = 0 : i64, scratch_operands = 0 : i64, tpu.core_type = #tpu.core_type<tc>, window_params = [{transform_indices = @transform_0, window_bounds = array<i64: 1, 4, 128>}, {pipeline_mode = #tpu.pipeline_mode<synchronous>, transform_indices = @transform_1, window_bounds = array<i64: 4, 4, 4>}, {pipeline_mode = #tpu.pipeline_mode<synchronous>, transform_indices = @transform_2, window_bounds = array<i64: 4, 4, 1>}, {transform_indices = @transform_3, window_bounds = array<i64: 1, 4, 16, 16>}]} {
    %c0 = arith.constant 0 : index
    %c0_0 = arith.constant 0 : index
    %c0_1 = arith.constant 0 : index
    %0 = vector.load %arg2[%c0, %c0_0, %c0_1] : memref<1x4x128xf32, #tpu.memory_space<vmem>>, vector<1x4x128xf32>
    %1 = vector.shape_cast %0 : vector<1x4x128xf32> to vector<4x128xf32>
    %2 = arith.truncf %1 : vector<4x128xf32> to vector<4x128xbf16>
    %c0_2 = arith.constant 0 : index
    %c0_3 = arith.constant 0 : index
    %c0_4 = arith.constant 0 : index
    %3 = vector.load %arg3[%c0_2, %c0_3, %c0_4] : memref<4x4x4xbf16, #tpu.memory_space<vmem>>, vector<1x4x4xbf16>
    %4 = vector.shape_cast %3 : vector<1x4x4xbf16> to vector<4x4xbf16>
    %cst = arith.constant dense<0.000000e+00> : vector<4x128xf32>
    %5 = tpu.matmul %4, %2, %cst {dimension_numbers = #tpu.dot_dimension_numbers<[1], [0], [0], [1], [0, 0, 1, 1], [], []>} : vector<4x4xbf16>, vector<4x128xbf16>, vector<4x128xf32> -> vector<4x128xf32>
    %c0_5 = arith.constant 0 : index
    %c0_6 = arith.constant 0 : index
    %c0_7 = arith.constant 0 : index
    %6 = vector.load %arg4[%c0_5, %c0_6, %c0_7] : memref<4x4x1xf32, #tpu.memory_space<vmem>>, vector<1x4x1xf32>
    %7 = vector.shape_cast %6 : vector<1x4x1xf32> to vector<4x1xf32>
    %8 = vector.broadcast %7 : vector<4x1xf32> to vector<4x128xf32>
    %9 = arith.addf %5, %8 : vector<4x128xf32>
    %c1 = arith.constant 1 : index
    %c0_8 = arith.constant 0 : index
    %c0_9 = arith.constant 0 : index
    %10 = vector.load %arg3[%c1, %c0_8, %c0_9] : memref<4x4x4xbf16, #tpu.memory_space<vmem>>, vector<1x4x4xbf16>
    %11 = vector.shape_cast %10 : vector<1x4x4xbf16> to vector<4x4xbf16>
    %cst_10 = arith.constant dense<0.000000e+00> : vector<4x128xf32>
    %12 = tpu.matmul %11, %2, %cst_10 {dimension_numbers = #tpu.dot_dimension_numbers<[1], [0], [0], [1], [0, 0, 1, 1], [], []>} : vector<4x4xbf16>, vector<4x128xbf16>, vector<4x128xf32> -> vector<4x128xf32>
    %c1_11 = arith.constant 1 : index
    %c0_12 = arith.constant 0 : index
    %c0_13 = arith.constant 0 : index
    %13 = vector.load %arg4[%c1_11, %c0_12, %c0_13] : memref<4x4x1xf32, #tpu.memory_space<vmem>>, vector<1x4x1xf32>
    %14 = vector.shape_cast %13 : vector<1x4x1xf32> to vector<4x1xf32>
    %15 = vector.broadcast %14 : vector<4x1xf32> to vector<4x128xf32>
    %16 = arith.addf %12, %15 : vector<4x128xf32>
    %17 = arith.truncf %9 : vector<4x128xf32> to vector<4x128xbf16>
    %18 = arith.extf %17 : vector<4x128xbf16> to vector<4x128xf32>
    %19 = tpu.bitcast %18 : vector<4x128xf32> -> vector<4x128xi32>
    %20 = arith.truncf %16 : vector<4x128xf32> to vector<4x128xbf16>
    %21 = arith.extf %20 : vector<4x128xbf16> to vector<4x128xf32>
    %22 = tpu.bitcast %21 : vector<4x128xf32> -> vector<4x128xi32>
    %c16_i32 = arith.constant 16 : i32
    %23 = vector.broadcast %c16_i32 : i32 to vector<4x128xi32>
    %24 = arith.shrui %19, %23 : vector<4x128xi32>
    %25 = arith.ori %24, %22 : vector<4x128xi32>
    %26 = vector.extract_strided_slice %25 {offsets = [0, 0], sizes = [4, 16], strides = [1, 1]} : vector<4x128xi32> to vector<4x16xi32>
    %c0_14 = arith.constant 0 : index
    %c0_15 = arith.constant 0 : index
    %c0_16 = arith.constant 0 : index
    %c0_17 = arith.constant 0 : index
    %27 = vector.load %arg5[%c0_14, %c0_15, %c0_16, %c0_17] : memref<1x4x16x16xi32, #tpu.memory_space<vmem>>, vector<1x4x1x16xi32>
    %28 = vector.shape_cast %27 : vector<1x4x1x16xi32> to vector<4x16xi32>
    %29 = vector.shape_cast %26 : vector<4x16xi32> to vector<1x4x1x16xi32>
    tpu.vector_store %arg5[%c0_14, %c0_15, %c0_16, %c0_17], %29 {strides = array<i32>} : memref<1x4x16x16xi32, #tpu.memory_space<vmem>>, vector<1x4x1x16xi32>,
    %30 = vector.extract_strided_slice %25 {offsets = [0, 16], sizes = [4, 16], strides = [1, 1]} : vector<4x128xi32> to vector<4x16xi32>
    %c0_18 = arith.constant 0 : index
    %c0_19 = arith.constant 0 : index
    %c2 = arith.constant 2 : index
    %c0_20 = arith.constant 0 : index
    %31 = vector.load %arg5[%c0_18, %c0_19, %c2, %c0_20] : memref<1x4x16x16xi32, #tpu.memory_space<vmem>>, vector<1x4x1x16xi32>
    %32 = vector.shape_cast %31 : vector<1x4x1x16xi32> to vector<4x16xi32>
    %33 = vector.shape_cast %30 : vector<4x16xi32> to vector<1x4x1x16xi32>
    tpu.vector_store %arg5[%c0_18, %c0_19, %c2, %c0_20], %33 {strides = array<i32>} : memref<1x4x16x16xi32, #tpu.memory_space<vmem>>, vector<1x4x1x16xi32>,
    %34 = vector.extract_strided_slice %25 {offsets = [0, 32], sizes = [4, 16], strides = [1, 1]} : vector<4x128xi32> to vector<4x16xi32>
    %c0_21 = arith.constant 0 : index
    %c0_22 = arith.constant 0 : index
    %c4 = arith.constant 4 : index
    %c0_23 = arith.constant 0 : index
    %35 = vector.load %arg5[%c0_21, %c0_22, %c4, %c0_23] : memref<1x4x16x16xi32, #tpu.memory_space<vmem>>, vector<1x4x1x16xi32>
    %36 = vector.shape_cast %35 : vector<1x4x1x16xi32> to vector<4x16xi32>
    %37 = vector.shape_cast %34 : vector<4x16xi32> to vector<1x4x1x16xi32>
    tpu.vector_store %arg5[%c0_21, %c0_22, %c4, %c0_23], %37 {strides = array<i32>} : memref<1x4x16x16xi32, #tpu.memory_space<vmem>>, vector<1x4x1x16xi32>,
    %38 = vector.extract_strided_slice %25 {offsets = [0, 48], sizes = [4, 16], strides = [1, 1]} : vector<4x128xi32> to vector<4x16xi32>
    %c0_24 = arith.constant 0 : index
    %c0_25 = arith.constant 0 : index
    %c6 = arith.constant 6 : index
    %c0_26 = arith.constant 0 : index
    %39 = vector.load %arg5[%c0_24, %c0_25, %c6, %c0_26] : memref<1x4x16x16xi32, #tpu.memory_space<vmem>>, vector<1x4x1x16xi32>
    %40 = vector.shape_cast %39 : vector<1x4x1x16xi32> to vector<4x16xi32>
    %41 = vector.shape_cast %38 : vector<4x16xi32> to vector<1x4x1x16xi32>
    tpu.vector_store %arg5[%c0_24, %c0_25, %c6, %c0_26], %41 {strides = array<i32>} : memref<1x4x16x16xi32, #tpu.memory_space<vmem>>, vector<1x4x1x16xi32>,
    %42 = vector.extract_strided_slice %25 {offsets = [0, 64], sizes = [4, 16], strides = [1, 1]} : vector<4x128xi32> to vector<4x16xi32>
    %c0_27 = arith.constant 0 : index
    %c0_28 = arith.constant 0 : index
    %c8 = arith.constant 8 : index
    %c0_29 = arith.constant 0 : index
    %43 = vector.load %arg5[%c0_27, %c0_28, %c8, %c0_29] : memref<1x4x16x16xi32, #tpu.memory_space<vmem>>, vector<1x4x1x16xi32>
    %44 = vector.shape_cast %43 : vector<1x4x1x16xi32> to vector<4x16xi32>
    %45 = vector.shape_cast %42 : vector<4x16xi32> to vector<1x4x1x16xi32>
    tpu.vector_store %arg5[%c0_27, %c0_28, %c8, %c0_29], %45 {strides = array<i32>} : memref<1x4x16x16xi32, #tpu.memory_space<vmem>>, vector<1x4x1x16xi32>,
    %46 = vector.extract_strided_slice %25 {offsets = [0, 80], sizes = [4, 16], strides = [1, 1]} : vector<4x128xi32> to vector<4x16xi32>
    %c0_30 = arith.constant 0 : index
    %c0_31 = arith.constant 0 : index
    %c10 = arith.constant 10 : index
    %c0_32 = arith.constant 0 : index
    %47 = vector.load %arg5[%c0_30, %c0_31, %c10, %c0_32] : memref<1x4x16x16xi32, #tpu.memory_space<vmem>>, vector<1x4x1x16xi32>
    %48 = vector.shape_cast %47 : vector<1x4x1x16xi32> to vector<4x16xi32>
    %49 = vector.shape_cast %46 : vector<4x16xi32> to vector<1x4x1x16xi32>
    tpu.vector_store %arg5[%c0_30, %c0_31, %c10, %c0_32], %49 {strides = array<i32>} : memref<1x4x16x16xi32, #tpu.memory_space<vmem>>, vector<1x4x1x16xi32>,
    %50 = vector.extract_strided_slice %25 {offsets = [0, 96], sizes = [4, 16], strides = [1, 1]} : vector<4x128xi32> to vector<4x16xi32>
    %c0_33 = arith.constant 0 : index
    %c0_34 = arith.constant 0 : index
    %c12 = arith.constant 12 : index
    %c0_35 = arith.constant 0 : index
    %51 = vector.load %arg5[%c0_33, %c0_34, %c12, %c0_35] : memref<1x4x16x16xi32, #tpu.memory_space<vmem>>, vector<1x4x1x16xi32>
    %52 = vector.shape_cast %51 : vector<1x4x1x16xi32> to vector<4x16xi32>
    %53 = vector.shape_cast %50 : vector<4x16xi32> to vector<1x4x1x16xi32>
    tpu.vector_store %arg5[%c0_33, %c0_34, %c12, %c0_35], %53 {strides = array<i32>} : memref<1x4x16x16xi32, #tpu.memory_space<vmem>>, vector<1x4x1x16xi32>,
    %54 = vector.extract_strided_slice %25 {offsets = [0, 112], sizes = [4, 16], strides = [1, 1]} : vector<4x128xi32> to vector<4x16xi32>
    %c0_36 = arith.constant 0 : index
    %c0_37 = arith.constant 0 : index
    %c14 = arith.constant 14 : index
    %c0_38 = arith.constant 0 : index
    %55 = vector.load %arg5[%c0_36, %c0_37, %c14, %c0_38] : memref<1x4x16x16xi32, #tpu.memory_space<vmem>>, vector<1x4x1x16xi32>
    %56 = vector.shape_cast %55 : vector<1x4x1x16xi32> to vector<4x16xi32>
    %57 = vector.shape_cast %54 : vector<4x16xi32> to vector<1x4x1x16xi32>
    tpu.vector_store %arg5[%c0_36, %c0_37, %c14, %c0_38], %57 {strides = array<i32>} : memref<1x4x16x16xi32, #tpu.memory_space<vmem>>, vector<1x4x1x16xi32>,
    %c2_39 = arith.constant 2 : index
    %c0_40 = arith.constant 0 : index
    %c0_41 = arith.constant 0 : index
    %58 = vector.load %arg3[%c2_39, %c0_40, %c0_41] : memref<4x4x4xbf16, #tpu.memory_space<vmem>>, vector<1x4x4xbf16>
    %59 = vector.shape_cast %58 : vector<1x4x4xbf16> to vector<4x4xbf16>
    %cst_42 = arith.constant dense<0.000000e+00> : vector<4x128xf32>
    %60 = tpu.matmul %59, %2, %cst_42 {dimension_numbers = #tpu.dot_dimension_numbers<[1], [0], [0], [1], [0, 0, 1, 1], [], []>} : vector<4x4xbf16>, vector<4x128xbf16>, vector<4x128xf32> -> vector<4x128xf32>
    %c2_43 = arith.constant 2 : index
    %c0_44 = arith.constant 0 : index
    %c0_45 = arith.constant 0 : index
    %61 = vector.load %arg4[%c2_43, %c0_44, %c0_45] : memref<4x4x1xf32, #tpu.memory_space<vmem>>, vector<1x4x1xf32>
    %62 = vector.shape_cast %61 : vector<1x4x1xf32> to vector<4x1xf32>
    %63 = vector.broadcast %62 : vector<4x1xf32> to vector<4x128xf32>
    %64 = arith.addf %60, %63 : vector<4x128xf32>
    %c3 = arith.constant 3 : index
    %c0_46 = arith.constant 0 : index
    %c0_47 = arith.constant 0 : index
    %65 = vector.load %arg3[%c3, %c0_46, %c0_47] : memref<4x4x4xbf16, #tpu.memory_space<vmem>>, vector<1x4x4xbf16>
    %66 = vector.shape_cast %65 : vector<1x4x4xbf16> to vector<4x4xbf16>
    %cst_48 = arith.constant dense<0.000000e+00> : vector<4x128xf32>
    %67 = tpu.matmul %66, %2, %cst_48 {dimension_numbers = #tpu.dot_dimension_numbers<[1], [0], [0], [1], [0, 0, 1, 1], [], []>} : vector<4x4xbf16>, vector<4x128xbf16>, vector<4x128xf32> -> vector<4x128xf32>
    %c3_49 = arith.constant 3 : index
    %c0_50 = arith.constant 0 : index
    %c0_51 = arith.constant 0 : index
    %68 = vector.load %arg4[%c3_49, %c0_50, %c0_51] : memref<4x4x1xf32, #tpu.memory_space<vmem>>, vector<1x4x1xf32>
    %69 = vector.shape_cast %68 : vector<1x4x1xf32> to vector<4x1xf32>
    %70 = vector.broadcast %69 : vector<4x1xf32> to vector<4x128xf32>
    %71 = arith.addf %67, %70 : vector<4x128xf32>
    %72 = arith.truncf %64 : vector<4x128xf32> to vector<4x128xbf16>
    %73 = arith.extf %72 : vector<4x128xbf16> to vector<4x128xf32>
    %74 = tpu.bitcast %73 : vector<4x128xf32> -> vector<4x128xi32>
    %75 = arith.truncf %71 : vector<4x128xf32> to vector<4x128xbf16>
    %76 = arith.extf %75 : vector<4x128xbf16> to vector<4x128xf32>
    %77 = tpu.bitcast %76 : vector<4x128xf32> -> vector<4x128xi32>
    %c16_i32_52 = arith.constant 16 : i32
    %78 = vector.broadcast %c16_i32_52 : i32 to vector<4x128xi32>
    %79 = arith.shrui %74, %78 : vector<4x128xi32>
    %80 = arith.ori %79, %77 : vector<4x128xi32>
    %81 = vector.extract_strided_slice %80 {offsets = [0, 0], sizes = [4, 16], strides = [1, 1]} : vector<4x128xi32> to vector<4x16xi32>
    %c0_53 = arith.constant 0 : index
    %c0_54 = arith.constant 0 : index
    %c1_55 = arith.constant 1 : index
    %c0_56 = arith.constant 0 : index
    %82 = vector.load %arg5[%c0_53, %c0_54, %c1_55, %c0_56] : memref<1x4x16x16xi32, #tpu.memory_space<vmem>>, vector<1x4x1x16xi32>
    %83 = vector.shape_cast %82 : vector<1x4x1x16xi32> to vector<4x16xi32>
    %84 = vector.shape_cast %81 : vector<4x16xi32> to vector<1x4x1x16xi32>
    tpu.vector_store %arg5[%c0_53, %c0_54, %c1_55, %c0_56], %84 {strides = array<i32>} : memref<1x4x16x16xi32, #tpu.memory_space<vmem>>, vector<1x4x1x16xi32>,
    %85 = vector.extract_strided_slice %80 {offsets = [0, 16], sizes = [4, 16], strides = [1, 1]} : vector<4x128xi32> to vector<4x16xi32>
    %c0_57 = arith.constant 0 : index
    %c0_58 = arith.constant 0 : index
    %c3_59 = arith.constant 3 : index
    %c0_60 = arith.constant 0 : index
    %86 = vector.load %arg5[%c0_57, %c0_58, %c3_59, %c0_60] : memref<1x4x16x16xi32, #tpu.memory_space<vmem>>, vector<1x4x1x16xi32>
    %87 = vector.shape_cast %86 : vector<1x4x1x16xi32> to vector<4x16xi32>
    %88 = vector.shape_cast %85 : vector<4x16xi32> to vector<1x4x1x16xi32>
    tpu.vector_store %arg5[%c0_57, %c0_58, %c3_59, %c0_60], %88 {strides = array<i32>} : memref<1x4x16x16xi32, #tpu.memory_space<vmem>>, vector<1x4x1x16xi32>,
    %89 = vector.extract_strided_slice %80 {offsets = [0, 32], sizes = [4, 16], strides = [1, 1]} : vector<4x128xi32> to vector<4x16xi32>
    %c0_61 = arith.constant 0 : index
    %c0_62 = arith.constant 0 : index
    %c5 = arith.constant 5 : index
    %c0_63 = arith.constant 0 : index
    %90 = vector.load %arg5[%c0_61, %c0_62, %c5, %c0_63] : memref<1x4x16x16xi32, #tpu.memory_space<vmem>>, vector<1x4x1x16xi32>
    %91 = vector.shape_cast %90 : vector<1x4x1x16xi32> to vector<4x16xi32>
    %92 = vector.shape_cast %89 : vector<4x16xi32> to vector<1x4x1x16xi32>
    tpu.vector_store %arg5[%c0_61, %c0_62, %c5, %c0_63], %92 {strides = array<i32>} : memref<1x4x16x16xi32, #tpu.memory_space<vmem>>, vector<1x4x1x16xi32>,
    %93 = vector.extract_strided_slice %80 {offsets = [0, 48], sizes = [4, 16], strides = [1, 1]} : vector<4x128xi32> to vector<4x16xi32>
    %c0_64 = arith.constant 0 : index
    %c0_65 = arith.constant 0 : index
    %c7 = arith.constant 7 : index
    %c0_66 = arith.constant 0 : index
    %94 = vector.load %arg5[%c0_64, %c0_65, %c7, %c0_66] : memref<1x4x16x16xi32, #tpu.memory_space<vmem>>, vector<1x4x1x16xi32>
    %95 = vector.shape_cast %94 : vector<1x4x1x16xi32> to vector<4x16xi32>
    %96 = vector.shape_cast %93 : vector<4x16xi32> to vector<1x4x1x16xi32>
    tpu.vector_store %arg5[%c0_64, %c0_65, %c7, %c0_66], %96 {strides = array<i32>} : memref<1x4x16x16xi32, #tpu.memory_space<vmem>>, vector<1x4x1x16xi32>,
    %97 = vector.extract_strided_slice %80 {offsets = [0, 64], sizes = [4, 16], strides = [1, 1]} : vector<4x128xi32> to vector<4x16xi32>
    %c0_67 = arith.constant 0 : index
    %c0_68 = arith.constant 0 : index
    %c9 = arith.constant 9 : index
    %c0_69 = arith.constant 0 : index
    %98 = vector.load %arg5[%c0_67, %c0_68, %c9, %c0_69] : memref<1x4x16x16xi32, #tpu.memory_space<vmem>>, vector<1x4x1x16xi32>
    %99 = vector.shape_cast %98 : vector<1x4x1x16xi32> to vector<4x16xi32>
    %100 = vector.shape_cast %97 : vector<4x16xi32> to vector<1x4x1x16xi32>
    tpu.vector_store %arg5[%c0_67, %c0_68, %c9, %c0_69], %100 {strides = array<i32>} : memref<1x4x16x16xi32, #tpu.memory_space<vmem>>, vector<1x4x1x16xi32>,
    %101 = vector.extract_strided_slice %80 {offsets = [0, 80], sizes = [4, 16], strides = [1, 1]} : vector<4x128xi32> to vector<4x16xi32>
    %c0_70 = arith.constant 0 : index
    %c0_71 = arith.constant 0 : index
    %c11 = arith.constant 11 : index
    %c0_72 = arith.constant 0 : index
    %102 = vector.load %arg5[%c0_70, %c0_71, %c11, %c0_72] : memref<1x4x16x16xi32, #tpu.memory_space<vmem>>, vector<1x4x1x16xi32>
    %103 = vector.shape_cast %102 : vector<1x4x1x16xi32> to vector<4x16xi32>
    %104 = vector.shape_cast %101 : vector<4x16xi32> to vector<1x4x1x16xi32>
    tpu.vector_store %arg5[%c0_70, %c0_71, %c11, %c0_72], %104 {strides = array<i32>} : memref<1x4x16x16xi32, #tpu.memory_space<vmem>>, vector<1x4x1x16xi32>,
    %105 = vector.extract_strided_slice %80 {offsets = [0, 96], sizes = [4, 16], strides = [1, 1]} : vector<4x128xi32> to vector<4x16xi32>
    %c0_73 = arith.constant 0 : index
    %c0_74 = arith.constant 0 : index
    %c13 = arith.constant 13 : index
    %c0_75 = arith.constant 0 : index
    %106 = vector.load %arg5[%c0_73, %c0_74, %c13, %c0_75] : memref<1x4x16x16xi32, #tpu.memory_space<vmem>>, vector<1x4x1x16xi32>
    %107 = vector.shape_cast %106 : vector<1x4x1x16xi32> to vector<4x16xi32>
    %108 = vector.shape_cast %105 : vector<4x16xi32> to vector<1x4x1x16xi32>
    tpu.vector_store %arg5[%c0_73, %c0_74, %c13, %c0_75], %108 {strides = array<i32>} : memref<1x4x16x16xi32, #tpu.memory_space<vmem>>, vector<1x4x1x16xi32>,
    %109 = vector.extract_strided_slice %80 {offsets = [0, 112], sizes = [4, 16], strides = [1, 1]} : vector<4x128xi32> to vector<4x16xi32>
    %c0_76 = arith.constant 0 : index
    %c0_77 = arith.constant 0 : index
    %c15 = arith.constant 15 : index
    %c0_78 = arith.constant 0 : index
    %110 = vector.load %arg5[%c0_76, %c0_77, %c15, %c0_78] : memref<1x4x16x16xi32, #tpu.memory_space<vmem>>, vector<1x4x1x16xi32>
    %111 = vector.shape_cast %110 : vector<1x4x1x16xi32> to vector<4x16xi32>
    %112 = vector.shape_cast %109 : vector<4x16xi32> to vector<1x4x1x16xi32>
    tpu.vector_store %arg5[%c0_76, %c0_77, %c15, %c0_78], %112 {strides = array<i32>} : memref<1x4x16x16xi32, #tpu.memory_space<vmem>>, vector<1x4x1x16xi32>,
    return
  }
  func.func @transform_0(%arg0: i32, %arg1: i32) -> (i32, i32, i32) {
    %c0_i32 = arith.constant 0 : i32
    %c0_i32_0 = arith.constant 0 : i32
    return %arg0, %c0_i32, %arg1 : i32, i32, i32
  }
  func.func @transform_1(%arg0: i32, %arg1: i32) -> (i32, i32, i32) {
    %c0_i32 = arith.constant 0 : i32
    %c0_i32_0 = arith.constant 0 : i32
    %c0_i32_1 = arith.constant 0 : i32
    %c0_i32_2 = arith.constant 0 : i32
    return %c0_i32, %c0_i32_0, %c0_i32_1 : i32, i32, i32
  }
  func.func @transform_2(%arg0: i32, %arg1: i32) -> (i32, i32, i32) {
    %c0_i32 = arith.constant 0 : i32
    %c0_i32_0 = arith.constant 0 : i32
    %c0_i32_1 = arith.constant 0 : i32
    %c0_i32_2 = arith.constant 0 : i32
    return %c0_i32, %c0_i32_0, %c0_i32_1 : i32, i32, i32
  }
  func.func @transform_3(%arg0: i32, %arg1: i32) -> (i32, i32, i32, i32) {
    %c0_i32 = arith.constant 0 : i32
    %c0_i32_0 = arith.constant 0 : i32
    %c0_i32_1 = arith.constant 0 : i32
    return %arg0, %c0_i32, %arg1, %c0_i32_0 : i32, i32, i32, i32
  }
}

module attributes {stable_mosaic.version = 11 : i64} {
  func.func @_proj_kernel(%arg0: i32, %arg1: i32, %arg2: memref<1x4x256xf32, #tpu.memory_space<vmem>>, %arg3: memref<16x4xbf16, #tpu.memory_space<vmem>>, %arg4: memref<16x1xf32, #tpu.memory_space<vmem>>, %arg5: memref<1x16x256xbf16, #tpu.memory_space<vmem>>) attributes {dimension_semantics = [#tpu.dimension_semantics<parallel>, #tpu.dimension_semantics<parallel>], iteration_bounds = array<i64: 2, 1>, scalar_prefetch = 0 : i64, scratch_operands = 0 : i64, tpu.core_type = #tpu.core_type<tc>, window_params = [{transform_indices = @transform_0, window_bounds = array<i64: 1, 4, 256>}, {pipeline_mode = #tpu.pipeline_mode<synchronous>, transform_indices = @transform_1, window_bounds = array<i64: 16, 4>}, {pipeline_mode = #tpu.pipeline_mode<synchronous>, transform_indices = @transform_2, window_bounds = array<i64: 16, 1>}, {transform_indices = @transform_3, window_bounds = array<i64: 1, 16, 256>}]} {
    %c0 = arith.constant 0 : index
    %c0_0 = arith.constant 0 : index
    %c0_1 = arith.constant 0 : index
    %0 = vector.load %arg2[%c0, %c0_0, %c0_1] : memref<1x4x256xf32, #tpu.memory_space<vmem>>, vector<1x4x256xf32>
    %1 = vector.shape_cast %0 : vector<1x4x256xf32> to vector<4x256xf32>
    %2 = arith.truncf %1 : vector<4x256xf32> to vector<4x256xbf16>
    %c0_2 = arith.constant 0 : index
    %c0_3 = arith.constant 0 : index
    %3 = vector.load %arg3[%c0_2, %c0_3] : memref<16x4xbf16, #tpu.memory_space<vmem>>, vector<16x4xbf16>
    %cst = arith.constant dense<0.000000e+00> : vector<16x256xf32>
    %4 = tpu.matmul %3, %2, %cst {dimension_numbers = #tpu.dot_dimension_numbers<[1], [0], [0], [1], [0, 0, 1, 1], [], []>} : vector<16x4xbf16>, vector<4x256xbf16>, vector<16x256xf32> -> vector<16x256xf32>
    %c0_4 = arith.constant 0 : index
    %c0_5 = arith.constant 0 : index
    %5 = vector.load %arg4[%c0_4, %c0_5] : memref<16x1xf32, #tpu.memory_space<vmem>>, vector<16x1xf32>
    %6 = vector.broadcast %5 : vector<16x1xf32> to vector<16x256xf32>
    %7 = arith.addf %4, %6 : vector<16x256xf32>
    %8 = arith.truncf %7 : vector<16x256xf32> to vector<16x256xbf16>
    %c0_6 = arith.constant 0 : index
    %c0_7 = arith.constant 0 : index
    %c0_8 = arith.constant 0 : index
    %9 = vector.load %arg5[%c0_6, %c0_7, %c0_8] : memref<1x16x256xbf16, #tpu.memory_space<vmem>>, vector<1x16x256xbf16>
    %10 = vector.shape_cast %9 : vector<1x16x256xbf16> to vector<16x256xbf16>
    %11 = vector.shape_cast %8 : vector<16x256xbf16> to vector<1x16x256xbf16>
    tpu.vector_store %arg5[%c0_6, %c0_7, %c0_8], %11 {strides = array<i32>} : memref<1x16x256xbf16, #tpu.memory_space<vmem>>, vector<1x16x256xbf16>,
    return
  }
  func.func @transform_0(%arg0: i32, %arg1: i32) -> (i32, i32, i32) {
    %c0_i32 = arith.constant 0 : i32
    %c0_i32_0 = arith.constant 0 : i32
    return %arg0, %c0_i32, %arg1 : i32, i32, i32
  }
  func.func @transform_1(%arg0: i32, %arg1: i32) -> (i32, i32) {
    %c0_i32 = arith.constant 0 : i32
    %c0_i32_0 = arith.constant 0 : i32
    %c0_i32_1 = arith.constant 0 : i32
    return %c0_i32, %c0_i32_0 : i32, i32
  }
  func.func @transform_2(%arg0: i32, %arg1: i32) -> (i32, i32) {
    %c0_i32 = arith.constant 0 : i32
    %c0_i32_0 = arith.constant 0 : i32
    %c0_i32_1 = arith.constant 0 : i32
    return %c0_i32, %c0_i32_0 : i32, i32
  }
  func.func @transform_3(%arg0: i32, %arg1: i32) -> (i32, i32, i32) {
    %c0_i32 = arith.constant 0 : i32
    %c0_i32_0 = arith.constant 0 : i32
    return %arg0, %c0_i32, %arg1 : i32, i32, i32
  }
}

</mosaic_0001>

<llo_original>
// kernel: tpu_custom_call.1
$region0: #{tpu_custom_call.1}
  #allocation0 [shape = 'u32[]', space=smem, size = 0x4, offset = 0x4, fixed_abs, tag = 'smem constant byte address 0x4 - core index']
  #allocation1 [shape = 'u32[72,128]{1,0:T(1,128)}', space=vmem, size = 0x9000, scoped, tag = 'internal scratch']
  %s0 = inlined_call_operand.vmem [shape: f32[2,4,256], index: 0, kind: input, shape index: {}]
  %s1 = inlined_call_operand.hbm [shape: bf16[4,4,4], index: 1, kind: input, shape index: {}]
  %s2 = inlined_call_operand.vmem [shape: f32[4,4,1], index: 2, kind: input, shape index: {}]
  %s3 = inlined_call_operand.vmem [shape: u32[2,4,32,16], index: 3, kind: output, shape index: {}]
  %s4 = sld [smem:[#allocation0]]
  $region83: #{tpu_custom_call.1} parent=0
    _
  %s6 = ssub.s32 1, %s4
  %s7 = scalar_select 0, %s6, %s4
  $region1: #{tpu_custom_call.1} parent=0
    #allocation2 [shape = 'u8[4096]{0}', space=vmem, size = 0x1000, scoped, tag = 'input window, operand 1, single buffered']
    #allocation3 [shape = 's32[2]{0}', space=sflag, size = 0x8, scoped, tag = 'scoped memory for tpu_custom_call.1']
    #allocation4 [shape = 'u8[65536]{0}', space=vmem, size = 0x10000, scoped, tag = 'output window, operand 0']
    %8 = vsyncpa [#allocation3], 0
    loop: start=0, step=1, limit=6
    $region2: #{tpu_custom_call.1} parent=1 // loop_pre_header
      _
    $region3: #{tpu_custom_call.1} parent=1 // loop_header
      %s10 = sphi 0, %s14
      %p11 = scmp.ge.s32.totalorder %s10, 6
      %s17 = sphi 0, %s29
      %s18 = sphi 0, %s25
      %s19 = sphi 0, %s17
      %s20 = sphi 0, %s18
      %s21 = sphi 0, %s19
      %s22 = sphi 0, %s20
      %s34 = sphi 0, %s36
      %s37 = sphi 0, %s34
      %s38 = sphi 0, %s37
      %s54 = sphi 0, %s38
      %s58 = sphi 0, %s58
      %s60 = sphi 0, %s58
      %s61 = sphi 0, %s60
      %s75 = sphi 0, %s61
      %s79 = sphi 0, %s79
      %s81 = sphi 0, %s79
      %s82 = sphi 0, %s81
      %s96 = sphi 0, %s82
      %s104 = sphi 0, %s106
      %s107 = sphi 0, %s104
      %s108 = sphi 0, %s107
      %s124 = sphi 0, %s108
    $region4: #{tpu_custom_call.1} parent=1 // loop_header_branch
      %13 = sbr.rel (%p11) target = $region8
    $region5: #{tpu_custom_call.1} parent=1 // loop_body
      %s15 = ssub.s32 %s10, 1
      %s16 = ssub.s32 %s10, 2
      %s23 = sadd.s32 1, %s18
      %p24 = scmp.ge.s32.totalorder %s23, 2
      %s25 = scalar_select %p24, 0, %s23
      %s26 = sadd.s32 1, %s17
      %s27 = scalar_select %p24, %s26, %s17
      %p28 = scmp.ge.s32.totalorder %s27, 2
      %s29 = scalar_select %p28, 0, %s27
      %s30 = ssub.s32 %s17, %s29
      %s31 = ssub.s32 %s18, %s25
      %s32 = sor.u32 %s30, %s31
      %p33 = scmp.eq.s32.totalorder %s32, 0
      %s35 = sadd.s32 %s34, 1
      %s36 = scalar_select %p33, %s34, %s35
      %p39 = pneg %p33
      %p40 = scmp.eq.s32.totalorder %s10, 3
      %p41 = por %p39, %p40
      %p42 = scmp.ne.s32.totalorder %s34, %s37
      %p43 = scmp.eq.s32.totalorder %s10, 0
      %p44 = por %p42, %p43
      %p45 = scmp.ne.s32.totalorder %s34, %s37
      %p46 = scmp.eq.s32.totalorder %s15, 3
      %p47 = por %p45, %p46
      %p48 = scmp.ne.s32.totalorder %s37, %s38
      %p49 = scmp.eq.s32.totalorder %s15, 0
      %p50 = por %p48, %p49
      %p51 = scmp.ne.s32.totalorder %s37, %s38
      %p52 = scmp.eq.s32.totalorder %s16, 3
      %p53 = por %p51, %p52
      %p55 = scmp.ne.s32.totalorder %s38, %s54
      %p56 = scmp.eq.s32.totalorder %s16, 0
      %p57 = por %p55, %p56
      %s59 = sadd.s32 %s58, 1
      %p62 = scmp.eq.s32.totalorder %s10, 3
      %p63 = scmp.ne.s32.totalorder %s58, %s60
      %p64 = scmp.eq.s32.totalorder %s10, 0
      %p65 = por %p63, %p64
      %p66 = scmp.ne.s32.totalorder %s58, %s60
      %p67 = scmp.eq.s32.totalorder %s15, 3
      %p68 = por %p66, %p67
      %p69 = scmp.ne.s32.totalorder %s60, %s61
      %p70 = scmp.eq.s32.totalorder %s15, 0
      %p71 = por %p69, %p70
      %p72 = scmp.ne.s32.totalorder %s60, %s61
      %p73 = scmp.eq.s32.totalorder %s16, 3
      %p74 = por %p72, %p73
      %p76 = scmp.ne.s32.totalorder %s61, %s75
      %p77 = scmp.eq.s32.totalorder %s16, 0
      %p78 = por %p76, %p77
      %s80 = sadd.s32 %s79, 1
      %p83 = scmp.eq.s32.totalorder %s10, 3
      %p84 = scmp.ne.s32.totalorder %s79, %s81
      %p85 = scmp.eq.s32.totalorder %s10, 0
      %p86 = por %p84, %p85
      %p87 = scmp.ne.s32.totalorder %s79, %s81
      %p88 = scmp.eq.s32.totalorder %s15, 3
      %p89 = por %p87, %p88
      %p90 = scmp.ne.s32.totalorder %s81, %s82
      %p91 = scmp.eq.s32.totalorder %s15, 0
      %p92 = por %p90, %p91
      %p93 = scmp.ne.s32.totalorder %s81, %s82
      %p94 = scmp.eq.s32.totalorder %s16, 3
      %p95 = por %p93, %p94
      %p97 = scmp.ne.s32.totalorder %s82, %s96
      %p98 = scmp.eq.s32.totalorder %s16, 0
      %p99 = por %p97, %p98
      %s100 = ssub.s32 %s17, %s29
      %s101 = ssub.s32 %s18, %s25
      %s102 = sor.u32 %s100, %s101
      %p103 = scmp.eq.s32.totalorder %s102, 0
      %s105 = sadd.s32 %s104, 1
      %s106 = scalar_select %p103, %s104, %s105
      %p109 = pneg %p103
      %p110 = scmp.eq.s32.totalorder %s10, 3
      %p111 = por %p109, %p110
      %p112 = scmp.ne.s32.totalorder %s104, %s107
      %p113 = scmp.eq.s32.totalorder %s10, 0
      %p114 = por %p112, %p113
      %p115 = scmp.ne.s32.totalorder %s104, %s107
      %p116 = scmp.eq.s32.totalorder %s15, 3
      %p117 = por %p115, %p116
      %p118 = scmp.ne.s32.totalorder %s107, %s108
      %p119 = scmp.eq.s32.totalorder %s15, 0
      %p120 = por %p118, %p119
      %p121 = scmp.ne.s32.totalorder %s107, %s108
      %p122 = scmp.eq.s32.totalorder %s16, 3
      %p123 = por %p121, %p122
      %p125 = scmp.ne.s32.totalorder %s108, %s124
      %p126 = scmp.eq.s32.totalorder %s16, 0
      %p127 = por %p125, %p126
      %p128 = scmp.le.s32.totalorder 1, %s10
      %p129 = scmp.lt.s32.totalorder %s10, 5
      %p130 = pnand %p128, %p129
      %p131 = pneg %p130
      // Predicated region
      $region9: #{tpu_custom_call.1} parent=5 // pred_check
        _
      $region10: #{tpu_custom_call.1} parent=5 // pred_check_branch
        %133 = sbr.rel (%p130) target = $region12
      $region11: #{tpu_custom_call.1} parent=5 // pred_region
        %s134 = ssub.s32 %s10, 1
        // Predicated region
        $region13: #{tpu_custom_call.1} parent=11 // pred_check
          %p135 = pneg %p71
        $region14: #{tpu_custom_call.1} parent=11 // pred_check_branch
          %137 = sbr.rel (%p135) target = $region16
        $region15: #{tpu_custom_call.1} parent=11 // pred_region
          %139 = vsyncadd [#allocation3], 0
          %s140 = sshll.u32 %s1, 4
          %s141 = int_to_ptr.hbm [resolvable:$true] %s140
          %s142 = sshll.u32 [#allocation2], 4
          %s143 = int_to_ptr.vmem [resolvable:$true] %s142
          %148 = dma.hbm_to_vmem [thread:$0]  %s141, 128, %s143, [#allocation3], 32, 32, 2
        $region16: #{tpu_custom_call.1} parent=11 // pred_fallthru
          _
        // Predicated region
        $region17: #{tpu_custom_call.1} parent=11 // pred_check
          %p149 = pneg %p92
        $region18: #{tpu_custom_call.1} parent=11 // pred_check_branch
          %151 = sbr.rel (%p149) target = $region20
        $region19: #{tpu_custom_call.1} parent=11 // pred_region
          _
        $region20: #{tpu_custom_call.1} parent=11 // pred_fallthru
          _
      $region12: #{tpu_custom_call.1} parent=5 // pred_fallthru
        _
      %p152 = scmp.lt.s32.totalorder %s10, 4
      // Predicated region
      $region21: #{tpu_custom_call.1} parent=5 // pred_check
        %p153 = pneg %p152
      $region22: #{tpu_custom_call.1} parent=5 // pred_check_branch
        %155 = sbr.rel (%p153) target = $region24
      $region23: #{tpu_custom_call.1} parent=5 // pred_region
        // Predicated region
        $region25: #{tpu_custom_call.1} parent=23 // pred_check
          %p156 = pneg %p44
        $region26: #{tpu_custom_call.1} parent=23 // pred_check_branch
          %158 = sbr.rel (%p156) target = $region28
        $region27: #{tpu_custom_call.1} parent=23 // pred_region
          %p159 = scmp.lt.s32.totalorder %s17, 1
          %s160 = scalar_select %p159, %s17, 1
          %p161 = scmp.lt.s32.totalorder %s18, 1
          %s162 = scalar_select %p161, %s18, 1
          %s163 = smul.addr %s160, 2
          %s164 = sadd.s32 %s162, %s163
          %s165 = smul.addr %s164, 4
          %s166 = scalar_lea.vmem %s0, %s165
        $region28: #{tpu_custom_call.1} parent=23 // pred_fallthru
          _
      $region24: #{tpu_custom_call.1} parent=5 // pred_fallthru
        _
      %p167 = scmp.le.s32.totalorder 1, %s10
      %p168 = scmp.lt.s32.totalorder %s10, 5
      %p169 = pnand %p167, %p168
      %p170 = pneg %p169
      // Predicated region
      $region29: #{tpu_custom_call.1} parent=5 // pred_check
        _
      $region30: #{tpu_custom_call.1} parent=5 // pred_check_branch
        %172 = sbr.rel (%p169) target = $region32
      $region31: #{tpu_custom_call.1} parent=5 // pred_region
        %s173 = ssub.s32 %s10, 1
        // Predicated region
        $region33: #{tpu_custom_call.1} parent=31 // pred_check
          %p174 = pneg %p71
        $region34: #{tpu_custom_call.1} parent=31 // pred_check_branch
          %176 = sbr.rel (%p174) target = $region36
        $region35: #{tpu_custom_call.1} parent=31 // pred_region
          %178 = dma.done [#allocation3], 128
        $region36: #{tpu_custom_call.1} parent=31 // pred_fallthru
          _
        %p179 = scmp.lt.s32.totalorder %s19, 1
        %s180 = scalar_select %p179, %s19, 1
        %p181 = scmp.lt.s32.totalorder %s20, 1
        %s182 = scalar_select %p181, %s20, 1
        %s183 = smul.addr %s180, 2
        %s184 = sadd.s32 %s182, %s183
        %s185 = smul.addr %s184, 4
        %s186 = scalar_lea.vmem %s0, %s185
        %p187 = pneg %p50
        %p188 = pneg %p47
        %p189 = pneg %p71
        %p190 = pneg %p68
        %p191 = pneg %p92
        %p192 = pneg %p89
        %p193 = pneg %p120
        %p194 = pneg %p117
        %s195 = sand.u32 %s107, 1
        %s196 = sand.u32 %s107, 1
        %s197 = smul.addr %s196, 64
        %s198 = scalar_lea.vmem [#allocation4], %s197
        %p199 = scmp.lt.s32.totalorder %s19, 1
        %s200 = scalar_select %p199, %s19, 1
        %p201 = scmp.lt.s32.totalorder %s20, 1
        %s202 = scalar_select %p201, %s20, 1
        %s203 = smul.addr %s200, 2
        %s204 = sadd.s32 %s202, %s203
        %s205 = smul.addr %s204, 4
        %s206 = scalar_lea.vmem %s0, %s205
        %s207 = smul.u32 2, %s20
        %v209 = vld [vmem:[%s206] sm:$0xf]
        %v210 = vpack.c.bf16 %v209, %v209
        %v211 = vld [vmem:[#allocation2] sm:$0x3]
        %v212 = vld [vmem:[%s2] sm:$0xf]
        %214 = vset.pattern.permute.xlu0 0
        %215 = vperm.xlu0 %214, %v212
        %v216 = vpop.permute.xlu0 %215
        %vm218 = vcmask 31744
        %v220 = vsel %vm218, %v211, 0
        %vm222 = vcmask 1041408
        %v224 = vsel %vm222, %v210, 0
        %226 = vmatpush.bf16.msra.mxu0 0
        %227 = vmatpush.bf16.msra.mxu0 0
        %228 = vmatpush.bf16.msra.mxu0 0
        %229 = vmatpush.bf16.msra.mxu0 0
        %230 = vmatpush.bf16.msra.mxu0 0
        %231 = vmatpush.bf16.msra.mxu0 0
        %232 = vmatpush.bf16.msra.mxu0 0
        %233 = vmatpush.bf16.msra.mxu0 %v224
        %234 = vmatmul.bf16.gmra.mxu0 %v220
        %v235 = vpop.f32.mrf.mxu0
        %v236 = vadd.f32 %v216, %v235
        %v237 = vpop.f32.mrf.mxu0
        %238 = vdwg.mxu0
        %s239 = scalar_lea.vmem [#allocation2], 2
        %v240 = vld [vmem:[%s239] sm:$0x3]
        %s241 = scalar_lea.vmem %s2, 4
        %v242 = vld [vmem:[%s241] sm:$0xf]
        %244 = vset.pattern.permute.xlu0 0
        %245 = vperm.xlu0 %244, %v242
        %v246 = vpop.permute.xlu0 %245
        %v249 = vsel %vm218, %v240, 0
        %251 = vmatpush.bf16.msra.mxu0 0
        %252 = vmatpush.bf16.msra.mxu0 0
        %253 = vmatpush.bf16.msra.mxu0 0
        %254 = vmatpush.bf16.msra.mxu0 0
        %255 = vmatpush.bf16.msra.mxu0 0
        %256 = vmatpush.bf16.msra.mxu0 0
        %257 = vmatpush.bf16.msra.mxu0 0
        %258 = vmatpush.bf16.msra.mxu0 %v224
        %259 = vmatmul.bf16.gmra.mxu0 %v249
        %v260 = vpop.f32.mrf.mxu0
        %v261 = vadd.f32 %v246, %v260
        %v262 = vpop.f32.mrf.mxu0
        %263 = vdwg.mxu0
        %v264 = vpack.c.bf16 %v236, %v236
        %v265 = vunpack.c.l.bf16 %v264
        %v267 = vpack.c.bf16 %v261, %v261
        %v268 = vunpack.c.l.bf16 %v267
        %v270 = vshrl.u32 %v265, 16
        %v271 = vor.u32 %v270, %v268
        %v272 = vrot.slane %v271, 1
        %v273 = vrot.slane %v271, 2
        %v274 = vrot.slane %v271, 3
        %vm275 = vcmask 122880
        %276 = vst.msk [vmem:[%s198] sm:$0x1] %vm275, %v271
        %277 = vst.msk [vmem:[%s198 + $0x10] sm:$0x1] %vm275, %v272
        %278 = vst.msk [vmem:[%s198 + $0x20] sm:$0x1] %vm275, %v273
        %279 = vst.msk [vmem:[%s198 + $0x30] sm:$0x1] %vm275, %v274
        %v280 = vperm.slane %v271, 0
        %v281 = vperm.slane %v272, 0
        %v282 = vperm.slane %v273, 0
        %v283 = vperm.slane %v274, 0
        %284 = vrot.lane.b32.xlu0 %v280, 112
        %v285 = vpop.permute.xlu0 %284
        %286 = vrot.lane.b32.xlu0 %v281, 112
        %v287 = vpop.permute.xlu0 %286
        %288 = vrot.lane.b32.xlu0 %v282, 112
        %v289 = vpop.permute.xlu0 %288
        %290 = vrot.lane.b32.xlu0 %v283, 112
        %v291 = vpop.permute.xlu0 %290
        %292 = vst.msk [vmem:[%s198 + $0x2] sm:$0x1] %vm275, %v285
        %293 = vst.msk [vmem:[%s198 + $0x12] sm:$0x1] %vm275, %v287
        %294 = vst.msk [vmem:[%s198 + $0x22] sm:$0x1] %vm275, %v289
        %295 = vst.msk [vmem:[%s198 + $0x32] sm:$0x1] %vm275, %v291
        %296 = vrot.lane.b32.xlu0 %v280, 96
        %v297 = vpop.permute.xlu0 %296
        %298 = vrot.lane.b32.xlu0 %v281, 96
        %v299 = vpop.permute.xlu0 %298
        %300 = vrot.lane.b32.xlu0 %v282, 96
        %v301 = vpop.permute.xlu0 %300
        %302 = vrot.lane.b32.xlu0 %v283, 96
        %v303 = vpop.permute.xlu0 %302
        %304 = vst.msk [vmem:[%s198 + $0x4] sm:$0x1] %vm275, %v297
        %305 = vst.msk [vmem:[%s198 + $0x14] sm:$0x1] %vm275, %v299
        %306 = vst.msk [vmem:[%s198 + $0x24] sm:$0x1] %vm275, %v301
        %307 = vst.msk [vmem:[%s198 + $0x34] sm:$0x1] %vm275, %v303
        %308 = vrot.lane.b32.xlu0 %v280, 80
        %v309 = vpop.permute.xlu0 %308
        %310 = vrot.lane.b32.xlu0 %v281, 80
        %v311 = vpop.permute.xlu0 %310
        %312 = vrot.lane.b32.xlu0 %v282, 80
        %v313 = vpop.permute.xlu0 %312
        %314 = vrot.lane.b32.xlu0 %v283, 80
        %v315 = vpop.permute.xlu0 %314
        %316 = vst.msk [vmem:[%s198 + $0x6] sm:$0x1] %vm275, %v309
        %317 = vst.msk [vmem:[%s198 + $0x16] sm:$0x1] %vm275, %v311
        %318 = vst.msk [vmem:[%s198 + $0x26] sm:$0x1] %vm275, %v313
        %319 = vst.msk [vmem:[%s198 + $0x36] sm:$0x1] %vm275, %v315
        %320 = vrot.lane.b32.xlu0 %v280, 64
        %v321 = vpop.permute.xlu0 %320
        %322 = vrot.lane.b32.xlu0 %v281, 64
        %v323 = vpop.permute.xlu0 %322
        %324 = vrot.lane.b32.xlu0 %v282, 64
        %v325 = vpop.permute.xlu0 %324
        %326 = vrot.lane.b32.xlu0 %v283, 64
        %v327 = vpop.permute.xlu0 %326
        %328 = vst.msk [vmem:[%s198 + $0x8] sm:$0x1] %vm275, %v321
        %329 = vst.msk [vmem:[%s198 + $0x18] sm:$0x1] %vm275, %v323
        %330 = vst.msk [vmem:[%s198 + $0x28] sm:$0x1] %vm275, %v325
        %331 = vst.msk [vmem:[%s198 + $0x38] sm:$0x1] %vm275, %v327
        %332 = vrot.lane.b32.xlu0 %v280, 48
        %v333 = vpop.permute.xlu0 %332
        %334 = vrot.lane.b32.xlu0 %v281, 48
        %v335 = vpop.permute.xlu0 %334
        %336 = vrot.lane.b32.xlu0 %v282, 48
        %v337 = vpop.permute.xlu0 %336
        %338 = vrot.lane.b32.xlu0 %v283, 48
        %v339 = vpop.permute.xlu0 %338
        %340 = vst.msk [vmem:[%s198 + $0xa] sm:$0x1] %vm275, %v333
        %341 = vst.msk [vmem:[%s198 + $0x1a] sm:$0x1] %vm275, %v335
        %342 = vst.msk [vmem:[%s198 + $0x2a] sm:$0x1] %vm275, %v337
        %343 = vst.msk [vmem:[%s198 + $0x3a] sm:$0x1] %vm275, %v339
        %344 = vrot.lane.b32.xlu0 %v280, 32
        %v345 = vpop.permute.xlu0 %344
        %346 = vrot.lane.b32.xlu0 %v281, 32
        %v347 = vpop.permute.xlu0 %346
        %348 = vrot.lane.b32.xlu0 %v282, 32
        %v349 = vpop.permute.xlu0 %348
        %350 = vrot.lane.b32.xlu0 %v283, 32
        %v351 = vpop.permute.xlu0 %350
        %352 = vst.msk [vmem:[%s198 + $0xc] sm:$0x1] %vm275, %v345
        %353 = vst.msk [vmem:[%s198 + $0x1c] sm:$0x1] %vm275, %v347
        %354 = vst.msk [vmem:[%s198 + $0x2c] sm:$0x1] %vm275, %v349
        %355 = vst.msk [vmem:[%s198 + $0x3c] sm:$0x1] %vm275, %v351
        %356 = vrot.lane.b32.xlu0 %v280, 16
        %v357 = vpop.permute.xlu0 %356
        %358 = vrot.lane.b32.xlu0 %v281, 16
        %v359 = vpop.permute.xlu0 %358
        %360 = vrot.lane.b32.xlu0 %v282, 16
        %v361 = vpop.permute.xlu0 %360
        %362 = vrot.lane.b32.xlu0 %v283, 16
        %v363 = vpop.permute.xlu0 %362
        %364 = vst.msk [vmem:[%s198 + $0xe] sm:$0x1] %vm275, %v357
        %365 = vst.msk [vmem:[%s198 + $0x1e] sm:$0x1] %vm275, %v359
        %366 = vst.msk [vmem:[%s198 + $0x2e] sm:$0x1] %vm275, %v361
        %367 = vst.msk [vmem:[%s198 + $0x3e] sm:$0x1] %vm275, %v363
        %s368 = scalar_lea.vmem [#allocation2], 4
        %v369 = vld [vmem:[%s368] sm:$0x3]
        %s370 = scalar_lea.vmem %s2, 8
        %v371 = vld [vmem:[%s370] sm:$0xf]
        %373 = vset.pattern.permute.xlu0 0
        %374 = vperm.xlu0 %373, %v371
        %v375 = vpop.permute.xlu0 %374
        %v378 = vsel %vm218, %v369, 0
        %380 = vmatpush.bf16.msra.mxu0 0
        %381 = vmatpush.bf16.msra.mxu0 0
        %382 = vmatpush.bf16.msra.mxu0 0
        %383 = vmatpush.bf16.msra.mxu0 0
        %384 = vmatpush.bf16.msra.mxu0 0
        %385 = vmatpush.bf16.msra.mxu0 0
        %386 = vmatpush.bf16.msra.mxu0 0
        %387 = vmatpush.bf16.msra.mxu0 %v224
        %388 = vmatmul.bf16.gmra.mxu0 %v378
        %v389 = vpop.f32.mrf.mxu0
        %v390 = vadd.f32 %v375, %v389
        %v391 = vpop.f32.mrf.mxu0
        %392 = vdwg.mxu0
        %s393 = scalar_lea.vmem [#allocation2], 6
        %v394 = vld [vmem:[%s393] sm:$0x3]
        %s395 = scalar_lea.vmem %s2, 12
        %v396 = vld [vmem:[%s395] sm:$0xf]
        %398 = vset.pattern.permute.xlu0 0
        %399 = vperm.xlu0 %398, %v396
        %v400 = vpop.permute.xlu0 %399
        %v403 = vsel %vm218, %v394, 0
        %405 = vmatpush.bf16.msra.mxu0 0
        %406 = vmatpush.bf16.msra.mxu0 0
        %407 = vmatpush.bf16.msra.mxu0 0
        %408 = vmatpush.bf16.msra.mxu0 0
        %409 = vmatpush.bf16.msra.mxu0 0
        %410 = vmatpush.bf16.msra.mxu0 0
        %411 = vmatpush.bf16.msra.mxu0 0
        %412 = vmatpush.bf16.msra.mxu0 %v224
        %413 = vmatmul.bf16.gmra.mxu0 %v403
        %v414 = vpop.f32.mrf.mxu0
        %v415 = vadd.f32 %v400, %v414
        %v416 = vpop.f32.mrf.mxu0
        %417 = vdwg.mxu0
        %v418 = vpack.c.bf16 %v390, %v390
        %v419 = vunpack.c.l.bf16 %v418
        %v421 = vpack.c.bf16 %v415, %v415
        %v422 = vunpack.c.l.bf16 %v421
        %v424 = vshrl.u32 %v419, 16
        %v425 = vor.u32 %v424, %v422
        %v426 = vrot.slane %v425, 1
        %v427 = vrot.slane %v425, 2
        %v428 = vrot.slane %v425, 3
        %429 = vst.msk [vmem:[%s198 + $0x1] sm:$0x1] %vm275, %v425
        %430 = vst.msk [vmem:[%s198 + $0x11] sm:$0x1] %vm275, %v426
        %431 = vst.msk [vmem:[%s198 + $0x21] sm:$0x1] %vm275, %v427
        %432 = vst.msk [vmem:[%s198 + $0x31] sm:$0x1] %vm275, %v428
        %v433 = vperm.slane %v425, 0
        %v434 = vperm.slane %v426, 0
        %v435 = vperm.slane %v427, 0
        %v436 = vperm.slane %v428, 0
        %437 = vrot.lane.b32.xlu0 %v433, 112
        %v438 = vpop.permute.xlu0 %437
        %439 = vrot.lane.b32.xlu0 %v434, 112
        %v440 = vpop.permute.xlu0 %439
        %441 = vrot.lane.b32.xlu0 %v435, 112
        %v442 = vpop.permute.xlu0 %441
        %443 = vrot.lane.b32.xlu0 %v436, 112
        %v444 = vpop.permute.xlu0 %443
        %445 = vst.msk [vmem:[%s198 + $0x3] sm:$0x1] %vm275, %v438
        %446 = vst.msk [vmem:[%s198 + $0x13] sm:$0x1] %vm275, %v440
        %447 = vst.msk [vmem:[%s198 + $0x23] sm:$0x1] %vm275, %v442
        %448 = vst.msk [vmem:[%s198 + $0x33] sm:$0x1] %vm275, %v444
        %449 = vrot.lane.b32.xlu0 %v433, 96
        %v450 = vpop.permute.xlu0 %449
        %451 = vrot.lane.b32.xlu0 %v434, 96
        %v452 = vpop.permute.xlu0 %451
        %453 = vrot.lane.b32.xlu0 %v435, 96
        %v454 = vpop.permute.xlu0 %453
        %455 = vrot.lane.b32.xlu0 %v436, 96
        %v456 = vpop.permute.xlu0 %455
        %457 = vst.msk [vmem:[%s198 + $0x5] sm:$0x1] %vm275, %v450
        %458 = vst.msk [vmem:[%s198 + $0x15] sm:$0x1] %vm275, %v452
        %459 = vst.msk [vmem:[%s198 + $0x25] sm:$0x1] %vm275, %v454
        %460 = vst.msk [vmem:[%s198 + $0x35] sm:$0x1] %vm275, %v456
        %461 = vrot.lane.b32.xlu0 %v433, 80
        %v462 = vpop.permute.xlu0 %461
        %463 = vrot.lane.b32.xlu0 %v434, 80
        %v464 = vpop.permute.xlu0 %463
        %465 = vrot.lane.b32.xlu0 %v435, 80
        %v466 = vpop.permute.xlu0 %465
        %467 = vrot.lane.b32.xlu0 %v436, 80
        %v468 = vpop.permute.xlu0 %467
        %469 = vst.msk [vmem:[%s198 + $0x7] sm:$0x1] %vm275, %v462
        %470 = vst.msk [vmem:[%s198 + $0x17] sm:$0x1] %vm275, %v464
        %471 = vst.msk [vmem:[%s198 + $0x27] sm:$0x1] %vm275, %v466
        %472 = vst.msk [vmem:[%s198 + $0x37] sm:$0x1] %vm275, %v468
        %473 = vrot.lane.b32.xlu0 %v433, 64
        %v474 = vpop.permute.xlu0 %473
        %475 = vrot.lane.b32.xlu0 %v434, 64
        %v476 = vpop.permute.xlu0 %475
        %477 = vrot.lane.b32.xlu0 %v435, 64
        %v478 = vpop.permute.xlu0 %477
        %479 = vrot.lane.b32.xlu0 %v436, 64
        %v480 = vpop.permute.xlu0 %479
        %481 = vst.msk [vmem:[%s198 + $0x9] sm:$0x1] %vm275, %v474
        %482 = vst.msk [vmem:[%s198 + $0x19] sm:$0x1] %vm275, %v476
        %483 = vst.msk [vmem:[%s198 + $0x29] sm:$0x1] %vm275, %v478
        %484 = vst.msk [vmem:[%s198 + $0x39] sm:$0x1] %vm275, %v480
        %485 = vrot.lane.b32.xlu0 %v433, 48
        %v486 = vpop.permute.xlu0 %485
        %487 = vrot.lane.b32.xlu0 %v434, 48
        %v488 = vpop.permute.xlu0 %487
        %489 = vrot.lane.b32.xlu0 %v435, 48
        %v490 = vpop.permute.xlu0 %489
        %491 = vrot.lane.b32.xlu0 %v436, 48
        %v492 = vpop.permute.xlu0 %491
        %493 = vst.msk [vmem:[%s198 + $0xb] sm:$0x1] %vm275, %v486
        %494 = vst.msk [vmem:[%s198 + $0x1b] sm:$0x1] %vm275, %v488
        %495 = vst.msk [vmem:[%s198 + $0x2b] sm:$0x1] %vm275, %v490
        %496 = vst.msk [vmem:[%s198 + $0x3b] sm:$0x1] %vm275, %v492
        %497 = vrot.lane.b32.xlu0 %v433, 32
        %v498 = vpop.permute.xlu0 %497
        %499 = vrot.lane.b32.xlu0 %v434, 32
        %v500 = vpop.permute.xlu0 %499
        %501 = vrot.lane.b32.xlu0 %v435, 32
        %v502 = vpop.permute.xlu0 %501
        %503 = vrot.lane.b32.xlu0 %v436, 32
        %v504 = vpop.permute.xlu0 %503
        %505 = vst.msk [vmem:[%s198 + $0xd] sm:$0x1] %vm275, %v498
        %506 = vst.msk [vmem:[%s198 + $0x1d] sm:$0x1] %vm275, %v500
        %507 = vst.msk [vmem:[%s198 + $0x2d] sm:$0x1] %vm275, %v502
        %508 = vst.msk [vmem:[%s198 + $0x3d] sm:$0x1] %vm275, %v504
        %509 = vrot.lane.b32.xlu0 %v433, 16
        %v510 = vpop.permute.xlu0 %509
        %511 = vrot.lane.b32.xlu0 %v434, 16
        %v512 = vpop.permute.xlu0 %511
        %513 = vrot.lane.b32.xlu0 %v435, 16
        %v514 = vpop.permute.xlu0 %513
        %515 = vrot.lane.b32.xlu0 %v436, 16
        %v516 = vpop.permute.xlu0 %515
        %517 = vst.msk [vmem:[%s198 + $0xf] sm:$0x1] %vm275, %v510
        %518 = vst.msk [vmem:[%s198 + $0x1f] sm:$0x1] %vm275, %v512
        %519 = vst.msk [vmem:[%s198 + $0x2f] sm:$0x1] %vm275, %v514
        %520 = vst.msk [vmem:[%s198 + $0x3f] sm:$0x1] %vm275, %v516
        %s521 = sand.u32 %s107, 1
        %s522 = sand.u32 %s107, 1
        %s523 = smul.addr %s522, 64
        %s524 = scalar_lea.vmem [#allocation4], %s523
        // Predicated region
        $region37: #{tpu_custom_call.1} parent=31 // pred_check
          %p525 = pneg %p117
        $region38: #{tpu_custom_call.1} parent=31 // pred_check_branch
          %527 = sbr.rel (%p525) target = $region40
        $region39: #{tpu_custom_call.1} parent=31 // pred_region
          %s528 = smul.u32 2, %s20
          %s529 = smul.addr %s19, 16
          %s530 = sadd.s32 %s528, %s529
          %s531 = smul.addr %s530, 8
          %s532 = scalar_lea.vmem %s3, %s531
          // Predicated region
          $region41: #{tpu_custom_call.1} parent=39 // pred_check
            _
          $region42: #{tpu_custom_call.1} parent=39 // pred_check_branch
            %534 = sbr.rel (0) target = $region44
          $region43: #{tpu_custom_call.1} parent=39 // pred_region
            // Predicated region
            $region45: #{tpu_custom_call.1} parent=43 // pred_check
              _
            $region46: #{tpu_custom_call.1} parent=43 // pred_check_branch
              %536 = sbr.rel (0) target = $region48
            $region47: #{tpu_custom_call.1} parent=43 // pred_region
              // Predicated region
              $region60: #{tpu_custom_call.1} parent=47 // pred_check
                _
              $region61: #{tpu_custom_call.1} parent=47 // pred_check_branch
                %566 = sbr.rel (0) target = $region63
              $region62: #{tpu_custom_call.1} parent=47 // pred_region
                loop: start=0, step=1, limit=1
                $region64: #{tpu_custom_call.1} parent=62 // loop_pre_header
                  _
                $region65: #{tpu_custom_call.1} parent=62 // loop_header
                  %s568 = sphi 0, %s572
                  %p569 = scmp.ge.s32.totalorder %s568, 1
                  %s573 = sphi %s524, %s524
                  %s574 = sphi %s532, %s532
                $region66: #{tpu_custom_call.1} parent=62 // loop_header_branch
                  %571 = sbr.rel (%p569) target = $region70
                $region67: #{tpu_custom_call.1} parent=62 // loop_body
                  %v575 = vld [vmem:[%s573] sm:$0xff]
                  %576 = vst [vmem:[%s574] sm:$0xff] %v575
                  %v577 = vld [vmem:[%s573 + $0x8] sm:$0xff]
                  %578 = vst [vmem:[%s574 + $0x8] sm:$0xff] %v577
                  %v579 = vld [vmem:[%s573 + $0x10] sm:$0xff]
                  %580 = vst [vmem:[%s574 + $0x20] sm:$0xff] %v579
                  %v581 = vld [vmem:[%s573 + $0x18] sm:$0xff]
                  %582 = vst [vmem:[%s574 + $0x28] sm:$0xff] %v581
                  %v583 = vld [vmem:[%s573 + $0x20] sm:$0xff]
                  %584 = vst [vmem:[%s574 + $0x40] sm:$0xff] %v583
                  %v585 = vld [vmem:[%s573 + $0x28] sm:$0xff]
                  %586 = vst [vmem:[%s574 + $0x48] sm:$0xff] %v585
                  %v587 = vld [vmem:[%s573 + $0x30] sm:$0xff]
                  %588 = vst [vmem:[%s574 + $0x60] sm:$0xff] %v587
                  %v589 = vld [vmem:[%s573 + $0x38] sm:$0xff]
                  %590 = vst [vmem:[%s574 + $0x68] sm:$0xff] %v589
                $region68: #{tpu_custom_call.1} parent=62 // loop_footer
                  %s572 = sadd.s32 1, %s568
                $region69: #{tpu_custom_call.1} parent=62 // loop_footer_branch
                  %567 = sbr.rel target = $region65
                $region70: #{tpu_custom_call.1} parent=62 // loop_exit
                  _
              $region63: #{tpu_custom_call.1} parent=47 // pred_fallthru
                _
              // Predicated region
              $region71: #{tpu_custom_call.1} parent=47 // pred_check
                _
              $region72: #{tpu_custom_call.1} parent=47 // pred_check_branch
                %592 = sbr.rel target = $region74
              $region73: #{tpu_custom_call.1} parent=47 // pred_region
                _
              $region74: #{tpu_custom_call.1} parent=47 // pred_fallthru
                _
            $region48: #{tpu_custom_call.1} parent=43 // pred_fallthru
              _
            // Predicated region
            $region49: #{tpu_custom_call.1} parent=43 // pred_check
              _
            $region50: #{tpu_custom_call.1} parent=43 // pred_check_branch
              %538 = sbr.rel target = $region52
            $region51: #{tpu_custom_call.1} parent=43 // pred_region
              %s540 = ssub.s32 256, 1
              loop: start=0, step=1, limit=1
              $region53: #{tpu_custom_call.1} parent=51 // loop_pre_header
                _
              $region54: #{tpu_custom_call.1} parent=51 // loop_header
                %s542 = sphi 0, %s546
                %p543 = scmp.ge.s32.totalorder %s542, 1
                %s547 = sphi %s524, %s524
                %s548 = sphi %s532, %s532
              $region55: #{tpu_custom_call.1} parent=51 // loop_header_branch
                %545 = sbr.rel (%p543) target = $region59
              $region56: #{tpu_custom_call.1} parent=51 // loop_body
                %v549 = vld [vmem:[%s547] sm:%s540]
                %550 = vst [vmem:[%s548] sm:%s540] %v549
                %v551 = vld [vmem:[%s547 + $0x8] sm:%s540]
                %552 = vst [vmem:[%s548 + $0x8] sm:%s540] %v551
                %v553 = vld [vmem:[%s547 + $0x10] sm:%s540]
                %554 = vst [vmem:[%s548 + $0x20] sm:%s540] %v553
                %v555 = vld [vmem:[%s547 + $0x18] sm:%s540]
                %556 = vst [vmem:[%s548 + $0x28] sm:%s540] %v555
                %v557 = vld [vmem:[%s547 + $0x20] sm:%s540]
                %558 = vst [vmem:[%s548 + $0x40] sm:%s540] %v557
                %v559 = vld [vmem:[%s547 + $0x28] sm:%s540]
                %560 = vst [vmem:[%s548 + $0x48] sm:%s540] %v559
                %v561 = vld [vmem:[%s547 + $0x30] sm:%s540]
                %562 = vst [vmem:[%s548 + $0x60] sm:%s540] %v561
                %v563 = vld [vmem:[%s547 + $0x38] sm:%s540]
                %564 = vst [vmem:[%s548 + $0x68] sm:%s540] %v563
              $region57: #{tpu_custom_call.1} parent=51 // loop_footer
                %s546 = sadd.s32 1, %s542
              $region58: #{tpu_custom_call.1} parent=51 // loop_footer_branch
                %541 = sbr.rel target = $region54
              $region59: #{tpu_custom_call.1} parent=51 // loop_exit
                _
            $region52: #{tpu_custom_call.1} parent=43 // pred_fallthru
              _
          $region44: #{tpu_custom_call.1} parent=39 // pred_fallthru
            _
          %593 = vnop
        $region40: #{tpu_custom_call.1} parent=31 // pred_fallthru
          _
      $region32: #{tpu_custom_call.1} parent=5 // pred_fallthru
        _
      %p594 = scmp.le.s32.totalorder 2, %s10
      // Predicated region
      $region75: #{tpu_custom_call.1} parent=5 // pred_check
        %p595 = pneg %p594
      $region76: #{tpu_custom_call.1} parent=5 // pred_check_branch
        %597 = sbr.rel (%p595) target = $region78
      $region77: #{tpu_custom_call.1} parent=5 // pred_region
        %s598 = ssub.s32 %s10, 2
        // Predicated region
        $region79: #{tpu_custom_call.1} parent=77 // pred_check
          %p599 = pneg %p123
        $region80: #{tpu_custom_call.1} parent=77 // pred_check_branch
          %601 = sbr.rel (%p599) target = $region82
        $region81: #{tpu_custom_call.1} parent=77 // pred_region
          %s602 = sand.u32 %s108, 1
          %s603 = sand.u32 %s108, 1
          %s604 = smul.addr %s603, 64
          %s605 = scalar_lea.vmem [#allocation4], %s604
        $region82: #{tpu_custom_call.1} parent=77 // pred_fallthru
          _
      $region78: #{tpu_custom_call.1} parent=5 // pred_fallthru
        _
    $region6: #{tpu_custom_call.1} parent=1 // loop_footer
      %s14 = sadd.s32 1, %s10
    $region7: #{tpu_custom_call.1} parent=1 // loop_footer_branch
      %9 = sbr.rel target = $region3
    $region8: #{tpu_custom_call.1} parent=1 // loop_exit
      _
    %606 = vsyncpa [#allocation3], 1
    %s607 = scalar_lea.sflag [#allocation3], 1
    %608 = vsyncpa %s607, 1

// kernel: tpu_custom_call.1
$region0: #{tpu_custom_call.1}
  #allocation0 [shape = 'u32[]', space=smem, size = 0x4, offset = 0x4, fixed_abs, tag = 'smem constant byte address 0x4 - core index']
  #allocation1 [shape = 'u32[72,128]{1,0:T(1,128)}', space=vmem, size = 0x9000, scoped, tag = 'internal scratch']
  %s0 = inlined_call_operand.vmem [shape: f32[2,4,256], index: 0, kind: input, shape index: {}]
  %s1 = inlined_call_operand.vmem [shape: bf16[16,4], index: 1, kind: input, shape index: {}]
  %s2 = inlined_call_operand.vmem [shape: f32[16,1], index: 2, kind: input, shape index: {}]
  %s3 = inlined_call_operand.hbm [shape: bf16[2,16,256], index: 3, kind: output, shape index: {}]
  %s4 = sld [smem:[#allocation0]]
  $region45: #{tpu_custom_call.1} parent=0
    _
  %s6 = ssub.s32 1, %s4
  %s7 = scalar_select 0, %s6, %s4
  $region1: #{tpu_custom_call.1} parent=0
    #allocation2 [shape = 'u8[16384]{0}', space=vmem, size = 0x4000, scoped, tag = 'output window, operand 0']
    #allocation3 [shape = 's32[2]{0}', space=sflag, size = 0x8, scoped, tag = 'scoped memory for tpu_custom_call.1']
    %8 = vsyncpa [#allocation3], 0
    %s9 = scalar_lea.sflag [#allocation3], 1
    %10 = vsyncpa %s9, 0
    loop: start=0, step=1, limit=4
    $region2: #{tpu_custom_call.1} parent=1 // loop_pre_header
      _
    $region3: #{tpu_custom_call.1} parent=1 // loop_header
      %s12 = sphi 0, %s16
      %p13 = scmp.ge.s32.totalorder %s12, 4
      %s19 = sphi 0, %s31
      %s20 = sphi 0, %s27
      %s21 = sphi 0, %s19
      %s22 = sphi 0, %s20
      %s23 = sphi 0, %s21
      %s24 = sphi 0, %s22
      %s36 = sphi 0, %s38
      %s39 = sphi 0, %s36
      %s40 = sphi 0, %s39
      %s56 = sphi 0, %s40
      %s60 = sphi 0, %s60
      %s62 = sphi 0, %s60
      %s63 = sphi 0, %s62
      %s77 = sphi 0, %s63
      %s81 = sphi 0, %s81
      %s83 = sphi 0, %s81
      %s84 = sphi 0, %s83
      %s98 = sphi 0, %s84
      %s106 = sphi 0, %s108
      %s109 = sphi 0, %s106
      %s110 = sphi 0, %s109
      %s126 = sphi 0, %s110
    $region4: #{tpu_custom_call.1} parent=1 // loop_header_branch
      %15 = sbr.rel (%p13) target = $region8
    $region5: #{tpu_custom_call.1} parent=1 // loop_body
      %s17 = ssub.s32 %s12, 1
      %s18 = ssub.s32 %s12, 2
      %s25 = sadd.s32 1, %s20
      %p26 = scmp.ge.s32.totalorder %s25, 1
      %s27 = scalar_select %p26, 0, %s25
      %s28 = sadd.s32 1, %s19
      %s29 = scalar_select %p26, %s28, %s19
      %p30 = scmp.ge.s32.totalorder %s29, 2
      %s31 = scalar_select %p30, 0, %s29
      %s32 = ssub.s32 %s19, %s31
      %s33 = ssub.s32 %s20, %s27
      %s34 = sor.u32 %s32, %s33
      %p35 = scmp.eq.s32.totalorder %s34, 0
      %s37 = sadd.s32 %s36, 1
      %s38 = scalar_select %p35, %s36, %s37
      %p41 = pneg %p35
      %p42 = scmp.eq.s32.totalorder %s12, 1
      %p43 = por %p41, %p42
      %p44 = scmp.ne.s32.totalorder %s36, %s39
      %p45 = scmp.eq.s32.totalorder %s12, 0
      %p46 = por %p44, %p45
      %p47 = scmp.ne.s32.totalorder %s36, %s39
      %p48 = scmp.eq.s32.totalorder %s17, 1
      %p49 = por %p47, %p48
      %p50 = scmp.ne.s32.totalorder %s39, %s40
      %p51 = scmp.eq.s32.totalorder %s17, 0
      %p52 = por %p50, %p51
      %p53 = scmp.ne.s32.totalorder %s39, %s40
      %p54 = scmp.eq.s32.totalorder %s18, 1
      %p55 = por %p53, %p54
      %p57 = scmp.ne.s32.totalorder %s40, %s56
      %p58 = scmp.eq.s32.totalorder %s18, 0
      %p59 = por %p57, %p58
      %s61 = sadd.s32 %s60, 1
      %p64 = scmp.eq.s32.totalorder %s12, 1
      %p65 = scmp.ne.s32.totalorder %s60, %s62
      %p66 = scmp.eq.s32.totalorder %s12, 0
      %p67 = por %p65, %p66
      %p68 = scmp.ne.s32.totalorder %s60, %s62
      %p69 = scmp.eq.s32.totalorder %s17, 1
      %p70 = por %p68, %p69
      %p71 = scmp.ne.s32.totalorder %s62, %s63
      %p72 = scmp.eq.s32.totalorder %s17, 0
      %p73 = por %p71, %p72
      %p74 = scmp.ne.s32.totalorder %s62, %s63
      %p75 = scmp.eq.s32.totalorder %s18, 1
      %p76 = por %p74, %p75
      %p78 = scmp.ne.s32.totalorder %s63, %s77
      %p79 = scmp.eq.s32.totalorder %s18, 0
      %p80 = por %p78, %p79
      %s82 = sadd.s32 %s81, 1
      %p85 = scmp.eq.s32.totalorder %s12, 1
      %p86 = scmp.ne.s32.totalorder %s81, %s83
      %p87 = scmp.eq.s32.totalorder %s12, 0
      %p88 = por %p86, %p87
      %p89 = scmp.ne.s32.totalorder %s81, %s83
      %p90 = scmp.eq.s32.totalorder %s17, 1
      %p91 = por %p89, %p90
      %p92 = scmp.ne.s32.totalorder %s83, %s84
      %p93 = scmp.eq.s32.totalorder %s17, 0
      %p94 = por %p92, %p93
      %p95 = scmp.ne.s32.totalorder %s83, %s84
      %p96 = scmp.eq.s32.totalorder %s18, 1
      %p97 = por %p95, %p96
      %p99 = scmp.ne.s32.totalorder %s84, %s98
      %p100 = scmp.eq.s32.totalorder %s18, 0
      %p101 = por %p99, %p100
      %s102 = ssub.s32 %s19, %s31
      %s103 = ssub.s32 %s20, %s27
      %s104 = sor.u32 %s102, %s103
      %p105 = scmp.eq.s32.totalorder %s104, 0
      %s107 = sadd.s32 %s106, 1
      %s108 = scalar_select %p105, %s106, %s107
      %p111 = pneg %p105
      %p112 = scmp.eq.s32.totalorder %s12, 1
      %p113 = por %p111, %p112
      %p114 = scmp.ne.s32.totalorder %s106, %s109
      %p115 = scmp.eq.s32.totalorder %s12, 0
      %p116 = por %p114, %p115
      %p117 = scmp.ne.s32.totalorder %s106, %s109
      %p118 = scmp.eq.s32.totalorder %s17, 1
      %p119 = por %p117, %p118
      %p120 = scmp.ne.s32.totalorder %s109, %s110
      %p121 = scmp.eq.s32.totalorder %s17, 0
      %p122 = por %p120, %p121
      %p123 = scmp.ne.s32.totalorder %s109, %s110
      %p124 = scmp.eq.s32.totalorder %s18, 1
      %p125 = por %p123, %p124
      %p127 = scmp.ne.s32.totalorder %s110, %s126
      %p128 = scmp.eq.s32.totalorder %s18, 0
      %p129 = por %p127, %p128
      %p130 = scmp.le.s32.totalorder 1, %s12
      %p131 = scmp.lt.s32.totalorder %s12, 3
      %p132 = pnand %p130, %p131
      %p133 = pneg %p132
      // Predicated region
      $region9: #{tpu_custom_call.1} parent=5 // pred_check
        _
      $region10: #{tpu_custom_call.1} parent=5 // pred_check_branch
        %135 = sbr.rel (%p132) target = $region12
      $region11: #{tpu_custom_call.1} parent=5 // pred_region
        %s136 = ssub.s32 %s12, 1
        // Predicated region
        $region13: #{tpu_custom_call.1} parent=11 // pred_check
          %p137 = pneg %p73
        $region14: #{tpu_custom_call.1} parent=11 // pred_check_branch
          %139 = sbr.rel (%p137) target = $region16
        $region15: #{tpu_custom_call.1} parent=11 // pred_region
          _
        $region16: #{tpu_custom_call.1} parent=11 // pred_fallthru
          _
        // Predicated region
        $region17: #{tpu_custom_call.1} parent=11 // pred_check
          %p140 = pneg %p94
        $region18: #{tpu_custom_call.1} parent=11 // pred_check_branch
          %142 = sbr.rel (%p140) target = $region20
        $region19: #{tpu_custom_call.1} parent=11 // pred_region
          _
        $region20: #{tpu_custom_call.1} parent=11 // pred_fallthru
          _
      $region12: #{tpu_custom_call.1} parent=5 // pred_fallthru
        _
      %p143 = scmp.lt.s32.totalorder %s12, 2
      // Predicated region
      $region21: #{tpu_custom_call.1} parent=5 // pred_check
        %p144 = pneg %p143
      $region22: #{tpu_custom_call.1} parent=5 // pred_check_branch
        %146 = sbr.rel (%p144) target = $region24
      $region23: #{tpu_custom_call.1} parent=5 // pred_region
        // Predicated region
        $region25: #{tpu_custom_call.1} parent=23 // pred_check
          %p147 = pneg %p46
        $region26: #{tpu_custom_call.1} parent=23 // pred_check_branch
          %149 = sbr.rel (%p147) target = $region28
        $region27: #{tpu_custom_call.1} parent=23 // pred_region
          %s150 = smul.u32 2, %s20
          %p151 = scmp.lt.s32.totalorder %s19, 1
          %s152 = scalar_select %p151, %s19, 1
          %p153 = scmp.lt.s32.totalorder %s150, 1
          %s154 = scalar_select %p153, %s150, 1
          %s155 = smul.addr %s152, 2
          %s156 = sadd.s32 %s154, %s155
          %s157 = smul.addr %s156, 4
          %s158 = scalar_lea.vmem %s0, %s157
          %s159 = smul.u32 2, %s20
        $region28: #{tpu_custom_call.1} parent=23 // pred_fallthru
          _
      $region24: #{tpu_custom_call.1} parent=5 // pred_fallthru
        _
      %p160 = scmp.le.s32.totalorder 1, %s12
      %p161 = scmp.lt.s32.totalorder %s12, 3
      %p162 = pnand %p160, %p161
      %p163 = pneg %p162
      // Predicated region
      $region29: #{tpu_custom_call.1} parent=5 // pred_check
        _
      $region30: #{tpu_custom_call.1} parent=5 // pred_check_branch
        %165 = sbr.rel (%p162) target = $region32
      $region31: #{tpu_custom_call.1} parent=5 // pred_region
        %s166 = ssub.s32 %s12, 1
        %s167 = smul.u32 2, %s22
        %p168 = scmp.lt.s32.totalorder %s21, 1
        %s169 = scalar_select %p168, %s21, 1
        %p170 = scmp.lt.s32.totalorder %s167, 1
        %s171 = scalar_select %p170, %s167, 1
        %s172 = smul.addr %s169, 2
        %s173 = sadd.s32 %s171, %s172
        %s174 = smul.addr %s173, 4
        %s175 = scalar_lea.vmem %s0, %s174
        %p176 = pneg %p52
        %p177 = pneg %p49
        %p178 = pneg %p73
        %p179 = pneg %p70
        %p180 = pneg %p94
        %p181 = pneg %p91
        %p182 = pneg %p122
        %p183 = pneg %p119
        %s184 = sand.u32 %s109, 1
        %s185 = scalar_lea.sflag [#allocation3], %s184
        %s186 = sand.u32 %s109, 1
        %s187 = smul.addr %s186, 16
        %s188 = scalar_lea.vmem [#allocation2], %s187
        %s189 = smul.u32 2, %s22
        %p190 = scmp.lt.s32.totalorder %s21, 1
        %s191 = scalar_select %p190, %s21, 1
        %p192 = scmp.lt.s32.totalorder %s189, 1
        %s193 = scalar_select %p192, %s189, 1
        %s194 = smul.addr %s191, 2
        %s195 = sadd.s32 %s193, %s194
        %s196 = smul.addr %s195, 4
        %s197 = scalar_lea.vmem %s0, %s196
        %s198 = smul.u32 2, %s22
        %s199 = smul.u32 2, %s22
        %v201 = vld [vmem:[%s197] sm:$0xff]
        %203 = vst [vmem:[#allocation1] ss:$2 sm:$0xff] %v201
        %v204 = vld.sshfl [vmem:[#allocation1] sm:$0xff pattern:$0x75316420]
        %v205 = vld.sshfl [vmem:[#allocation1 + $0x8] sm:$0xff pattern:$0x75316420]
        %v208 = vpack.c.bf16 %v204, %v204
        %v209 = vpack.c.bf16 %v205, %v205
        %v210 = vld [vmem:[%s1] sm:$0xf]
        %v211 = vld [vmem:[%s1 + $0x4] sm:$0xf]
        %v212 = vld [vmem:[%s2] sm:$0xff]
        %v213 = vld [vmem:[%s2 + $0x8] sm:$0xff]
        %215 = vset.pattern.permute.xlu0 0
        %216 = vperm.xlu0 %215, %v212
        %v217 = vpop.permute.xlu0 %216
        %220 = vset.pattern.permute.xlu0 0
        %221 = vperm.xlu0 %220, %v213
        %v222 = vpop.permute.xlu0 %221
        %v226 = vunpack.c.l.b16 %v210
        %v227 = vunpack.c.l.b16 %v211
        %v228 = vpack.c.b16 %v227, %v226
        %vm229 = vcmask 31744
        %v231 = vsel %vm229, %v228, 0
        %vm233 = vcmask 1041408
        %v235 = vsel %vm233, %v208, 0
        %v238 = vsel %vm233, %v209, 0
        %240 = vmatpush.bf16.msra.mxu0 0
        %241 = vmatpush.bf16.msra.mxu0 0
        %242 = vmatpush.bf16.msra.mxu0 0
        %243 = vmatpush.bf16.msra.mxu0 0
        %244 = vmatpush.bf16.msra.mxu0 0
        %245 = vmatpush.bf16.msra.mxu0 0
        %246 = vmatpush.bf16.msra.mxu0 0
        %247 = vmatpush.bf16.msra.mxu0 %v235
        %248 = vmatmul.bf16.gmra.mxu0 %v231
        %v249 = vpop.f32.mrf.mxu0
        %v250 = vadd.f32 %v217, %v249
        %v251 = vpop.f32.mrf.mxu0
        %v252 = vadd.f32 %v222, %v251
        %253 = vdwg.mxu0
        %254 = vmatpush.bf16.msra.mxu0 0
        %255 = vmatpush.bf16.msra.mxu0 0
        %256 = vmatpush.bf16.msra.mxu0 0
        %257 = vmatpush.bf16.msra.mxu0 0
        %258 = vmatpush.bf16.msra.mxu0 0
        %259 = vmatpush.bf16.msra.mxu0 0
        %260 = vmatpush.bf16.msra.mxu0 0
        %261 = vmatpush.bf16.msra.mxu0 %v238
        %262 = vmatmul.bf16.gmra.mxu0 %v231
        %v263 = vpop.f32.mrf.mxu0
        %v264 = vadd.f32 %v217, %v263
        %v265 = vpop.f32.mrf.mxu0
        %v266 = vadd.f32 %v222, %v265
        %267 = vdwg.mxu0
        %v268 = vpack.c.bf16 %v264, %v250
        %v269 = vpack.c.bf16 %v266, %v252
        %270 = vst [vmem:[%s188] sm:$0xff] %v268
        %271 = vst [vmem:[%s188 + $0x8] sm:$0xff] %v269
        %s272 = sand.u32 %s109, 1
        %s273 = scalar_lea.sflag [#allocation3], %s272
        %s274 = sand.u32 %s109, 1
        %s275 = smul.addr %s274, 16
        %s276 = scalar_lea.vmem [#allocation2], %s275
        // Predicated region
        $region33: #{tpu_custom_call.1} parent=31 // pred_check
          %p277 = pneg %p119
        $region34: #{tpu_custom_call.1} parent=31 // pred_check_branch
          %279 = sbr.rel (%p277) target = $region36
        $region35: #{tpu_custom_call.1} parent=31 // pred_region
          %s280 = smul.u32 2, %s22
          %282 = vsyncadd %s273, 0
          %s283 = smul.addr %s21, 4
          %s284 = sadd.s32 %s280, %s283
          %s285 = smul.addr %s284, 4
          %s286 = scalar_lea.hbm %s3, %s285
          %s287 = sshll.u32 %s276, 4
          %s288 = int_to_ptr.vmem [resolvable:$true] %s287
          %s289 = sshll.u32 %s286, 4
          %s290 = int_to_ptr.hbm [resolvable:$true] %s289
          %295 = dma.vmem_to_hbm [thread:$0]  %s288, 256, %s290, %s273, 128, 128, 8
        $region36: #{tpu_custom_call.1} parent=31 // pred_fallthru
          _
      $region32: #{tpu_custom_call.1} parent=5 // pred_fallthru
        _
      %p296 = scmp.le.s32.totalorder 2, %s12
      // Predicated region
      $region37: #{tpu_custom_call.1} parent=5 // pred_check
        %p297 = pneg %p296
      $region38: #{tpu_custom_call.1} parent=5 // pred_check_branch
        %299 = sbr.rel (%p297) target = $region40
      $region39: #{tpu_custom_call.1} parent=5 // pred_region
        %s300 = ssub.s32 %s12, 2
        // Predicated region
        $region41: #{tpu_custom_call.1} parent=39 // pred_check
          %p301 = pneg %p125
        $region42: #{tpu_custom_call.1} parent=39 // pred_check_branch
          %303 = sbr.rel (%p301) target = $region44
        $region43: #{tpu_custom_call.1} parent=39 // pred_region
          %s304 = sand.u32 %s110, 1
          %s305 = scalar_lea.sflag [#allocation3], %s304
          %s306 = sand.u32 %s110, 1
          %s307 = smul.addr %s306, 16
          %s308 = scalar_lea.vmem [#allocation2], %s307
          %310 = dma.done %s305, 256
        $region44: #{tpu_custom_call.1} parent=39 // pred_fallthru
          _
      $region40: #{tpu_custom_call.1} parent=5 // pred_fallthru
        _
    $region6: #{tpu_custom_call.1} parent=1 // loop_footer
      %s16 = sadd.s32 1, %s12
    $region7: #{tpu_custom_call.1} parent=1 // loop_footer_branch
      %11 = sbr.rel target = $region3
    $region8: #{tpu_custom_call.1} parent=1 // loop_exit
      _
    %311 = vsyncpa [#allocation3], 1
    %s312 = scalar_lea.sflag [#allocation3], 1
    %313 = vsyncpa %s312, 1

</llo_original>
